<compile_context>
chip_gen: v7x
topology: tpu7x:2x2x1
jax: 0.10.0
libtpu: 0.0.40
codegen_flags: <defaults>
</compile_context>

<pallas_src>
import jax
import jax.numpy as jnp
from jax.experimental import pallas as pl
from jax.experimental.pallas import tpu as pltpu


def add_conv1x1_kernel(a_ref, b_ref, w_ref, o_ref):
    # a_ref, b_ref: (1, C_in, HW); w_ref: (TILE_CO, C_in); o_ref: (1, TILE_CO, HW)
    # Fused: x = a + b ; o = w @ x   (1x1 conv, no bias, f32 MXU accumulation).
    # The add is tiny (C_in*HW elems) VPU work; recomputing it per C_out tile
    # is cheaper than an extra scratch + pl.when at this shape.
    x = a_ref[0] + b_ref[0]                               # (C_in, HW)
    o_ref[0] = jnp.dot(
        w_ref[...], x, preferred_element_type=jnp.float32
    ).astype(o_ref.dtype)


def _pick_tile_co(c_out, requested):
    """Largest 8-aligned divisor of c_out that is <= requested (never silently
    the full width unless nothing else fits)."""
    t = min(requested, c_out)
    t -= t % 8
    while t >= 8:
        if c_out % t == 0:
            return t
        t -= 8
    return c_out


def add_conv1x1(x618, x603, weight, *, tile_co=1152):
    """x618, x603: (N, C_in, H, W) f32; weight: (C_out, C_in, 1, 1).

    Returns (N, C_out, H, W), matching
    Conv2d(C_in, C_out, kernel_size=1, bias=False)(x618 + x603).
    """
    N, C_in, H, W = x618.shape
    C_out = weight.shape[0]
    HW = H * W

    # Free reshapes only — no transposes, no extra HBM round-trips.
    a = x618.reshape(N, C_in, HW)
    b = x603.reshape(N, C_in, HW)
    w = weight.reshape(C_out, C_in)

    tile_co = _pick_tile_co(C_out, tile_co)
    n_co_tiles = C_out // tile_co

    # Weight-tile axis outermost: the (tile_co, C_in) weight block is
    # independent of the inner batch axis, so it is DMA'd once per tile and
    # stays VMEM-resident while the small activation blocks stream.
    grid = (n_co_tiles, N)

    itemsize = jnp.dtype(x618.dtype).itemsize
    cost = pl.CostEstimate(
        flops=2 * N * HW * C_in * C_out,
        transcendentals=0,
        bytes_accessed=(
            2 * N * C_in * HW * itemsize   # a, b
            + C_out * C_in * itemsize      # weight (dominant)
            + N * C_out * HW * itemsize    # output
        ),
    )

    out = pl.pallas_call(
        add_conv1x1_kernel,
        out_shape=jax.ShapeDtypeStruct((N, C_out, HW), x618.dtype),
        grid=grid,
        in_specs=[
            pl.BlockSpec((1, C_in, HW), lambda j, n: (n, 0, 0)),
            pl.BlockSpec((1, C_in, HW), lambda j, n: (n, 0, 0)),
            pl.BlockSpec((tile_co, C_in), lambda j, n: (j, 0)),
        ],
        out_specs=pl.BlockSpec((1, tile_co, HW), lambda j, n: (n, j, 0)),
        compiler_params=pltpu.CompilerParams(
            # No reduction across the grid -> both axes parallel; on v7x the
            # two C_out tiles land one per TensorCore.
            dimension_semantics=("parallel", "parallel"),
        ),
        cost_estimate=cost,
    )(a, b, w)

    # (N, C_out, H*W) -> (N, C_out, H, W): free reshape.
    return out.reshape(N, C_out, H, W)


if __name__ == "__main__":
    key = jax.random.PRNGKey(0)
    k1, k2, k3 = jax.random.split(key, 3)

    N, C_in, H, W = 1, 384, 7, 7
    C_out = 2304

    x618 = jax.random.normal(k1, (N, C_in, H, W), dtype=jnp.float32)
    x603 = jax.random.normal(k2, (N, C_in, H, W), dtype=jnp.float32)
    # Deterministic weight init (kaiming-uniform-ish scale for a 1x1 conv)
    bound = 1.0 / (C_in ** 0.5)
    weight = jax.random.uniform(
        k3, (C_out, C_in, 1, 1), dtype=jnp.float32, minval=-bound, maxval=bound
    )

    out = add_conv1x1(x618, x603, weight)
    out = jax.block_until_ready(out)

    # Reference check in plain JAX
    w2d = weight.reshape(C_out, C_in)
    xsum = (x618 + x603).reshape(N, C_in, H * W)
    ref = jnp.einsum(
        "oc,nchw->nohw",
        w2d,
        xsum.reshape(N, C_in, H, W),
        preferred_element_type=jnp.float32,
    )

    assert out.shape == (N, C_out, H, W), out.shape
    assert jnp.allclose(out, ref, atol=1e-4, rtol=1e-4)

    print("KERNEL_OK")
</pallas_src>

<mosaic_0001>
module attributes {stable_mosaic.version = 11 : i64} {
  func.func @add_conv1x1_kernel(%arg0: i32, %arg1: i32, %arg2: memref<1x384x49xf32, #tpu.memory_space<vmem>>, %arg3: memref<1x384x49xf32, #tpu.memory_space<vmem>>, %arg4: memref<1152x384xf32, #tpu.memory_space<vmem>>, %arg5: memref<1x1152x49xf32, #tpu.memory_space<vmem>>) attributes {dimension_semantics = [#tpu.dimension_semantics<parallel>, #tpu.dimension_semantics<parallel>], iteration_bounds = array<i64: 2, 1>, scalar_prefetch = 0 : i64, scratch_operands = 0 : i64, tpu.core_type = #tpu.core_type<tc>, window_params = [{transform_indices = @transform_0, window_bounds = array<i64: 1, 384, 49>}, {transform_indices = @transform_1, window_bounds = array<i64: 1, 384, 49>}, {transform_indices = @transform_2, window_bounds = array<i64: 1152, 384>}, {transform_indices = @transform_3, window_bounds = array<i64: 1, 1152, 49>}]} {
    %c0 = arith.constant 0 : index
    %c0_0 = arith.constant 0 : index
    %c0_1 = arith.constant 0 : index
    %0 = vector.load %arg2[%c0, %c0_0, %c0_1] : memref<1x384x49xf32, #tpu.memory_space<vmem>>, vector<1x384x49xf32>
    %1 = vector.shape_cast %0 : vector<1x384x49xf32> to vector<384x49xf32>
    %c0_2 = arith.constant 0 : index
    %c0_3 = arith.constant 0 : index
    %c0_4 = arith.constant 0 : index
    %2 = vector.load %arg3[%c0_2, %c0_3, %c0_4] : memref<1x384x49xf32, #tpu.memory_space<vmem>>, vector<1x384x49xf32>
    %3 = vector.shape_cast %2 : vector<1x384x49xf32> to vector<384x49xf32>
    %4 = arith.addf %1, %3 : vector<384x49xf32>
    %c0_5 = arith.constant 0 : index
    %c0_6 = arith.constant 0 : index
    %5 = vector.load %arg4[%c0_5, %c0_6] : memref<1152x384xf32, #tpu.memory_space<vmem>>, vector<1152x384xf32>
    %cst = arith.constant dense<0.000000e+00> : vector<1152x49xf32>
    %6 = tpu.matmul %5, %4, %cst {dimension_numbers = #tpu.dot_dimension_numbers<[1], [0], [0], [1], [0, 0, 1, 1], [], []>} : vector<1152x384xf32>, vector<384x49xf32>, vector<1152x49xf32> -> vector<1152x49xf32>
    %c0_7 = arith.constant 0 : index
    %c0_8 = arith.constant 0 : index
    %c0_9 = arith.constant 0 : index
    %7 = vector.load %arg5[%c0_7, %c0_8, %c0_9] : memref<1x1152x49xf32, #tpu.memory_space<vmem>>, vector<1x1152x49xf32>
    %8 = vector.shape_cast %7 : vector<1x1152x49xf32> to vector<1152x49xf32>
    %9 = vector.shape_cast %6 : vector<1152x49xf32> to vector<1x1152x49xf32>
    tpu.vector_store %arg5[%c0_7, %c0_8, %c0_9], %9 {strides = array<i32>} : memref<1x1152x49xf32, #tpu.memory_space<vmem>>, vector<1x1152x49xf32>,
    return
  }
  func.func @transform_0(%arg0: i32, %arg1: i32) -> (i32, i32, i32) {
    %c0_i32 = arith.constant 0 : i32
    %c0_i32_0 = arith.constant 0 : i32
    %c0_i32_1 = arith.constant 0 : i32
    return %arg1, %c0_i32, %c0_i32_0 : i32, i32, i32
  }
  func.func @transform_1(%arg0: i32, %arg1: i32) -> (i32, i32, i32) {
    %c0_i32 = arith.constant 0 : i32
    %c0_i32_0 = arith.constant 0 : i32
    %c0_i32_1 = arith.constant 0 : i32
    return %arg1, %c0_i32, %c0_i32_0 : i32, i32, i32
  }
  func.func @transform_2(%arg0: i32, %arg1: i32) -> (i32, i32) {
    %c0_i32 = arith.constant 0 : i32
    %c0_i32_0 = arith.constant 0 : i32
    return %arg0, %c0_i32 : i32, i32
  }
  func.func @transform_3(%arg0: i32, %arg1: i32) -> (i32, i32, i32) {
    %c0_i32 = arith.constant 0 : i32
    %c0_i32_0 = arith.constant 0 : i32
    return %arg1, %arg0, %c0_i32 : i32, i32, i32
  }
}

</mosaic_0001>

<llo_original>
// kernel: tpu_custom_call.1
$region0: #{tpu_custom_call.1}
  #allocation0 [shape = 'u32[]', space=smem, size = 0x4, offset = 0x4, fixed_abs, tag = 'smem constant byte address 0x4 - core index']
  #allocation1 [shape = 'u32[144,128]{1,0:T(1,128)}', space=vmem, size = 0x12000, scoped, tag = 'internal scratch']
  %s0 = inlined_call_operand.vmem [shape: f32[1,384,49], index: 0, kind: input, shape index: {}]
  %s1 = inlined_call_operand.vmem [shape: f32[1,384,49], index: 1, kind: input, shape index: {}]
  %s2 = inlined_call_operand.hbm [shape: f32[2304,384], index: 2, kind: input, shape index: {}]
  %s3 = inlined_call_operand.vmem [shape: f32[1,2304,49], index: 3, kind: output, shape index: {}]
  %s4 = sld [smem:[#allocation0]]
  $region49: #{tpu_custom_call.1} parent=0
    _
  %s6 = ssub.s32 1, %s4
  %s7 = scalar_select 0, %s6, %s4
  $region1: #{tpu_custom_call.1} parent=0
    #allocation2 [shape = 'u8[3538944]{0}', space=vmem, size = 0x360000, scoped, tag = 'input window, operand 2']
    #allocation3 [shape = 's32[2]{0}', space=sflag, size = 0x8, scoped, tag = 'scoped memory for tpu_custom_call.1']
    %8 = vsyncpa [#allocation3], 0
    %s9 = scalar_lea.sflag [#allocation3], 1
    %10 = vsyncpa %s9, 0
    loop: start=0, step=1, limit=4
    $region2: #{tpu_custom_call.1} parent=1 // loop_pre_header
      _
    $region3: #{tpu_custom_call.1} parent=1 // loop_header
      %s12 = sphi 0, %s16
      %p13 = scmp.ge.s32.totalorder %s12, 4
      %s19 = sphi 0, %s31
      %s20 = sphi 0, %s27
      %s21 = sphi 0, %s19
      %s22 = sphi 0, %s20
      %s23 = sphi 0, %s21
      %s24 = sphi 0, %s22
      %s34 = sphi 0, %s36
      %s37 = sphi 0, %s34
      %s38 = sphi 0, %s37
      %s54 = sphi 0, %s38
      %s60 = sphi 0, %s62
      %s63 = sphi 0, %s60
      %s64 = sphi 0, %s63
      %s80 = sphi 0, %s64
      %s86 = sphi 0, %s88
      %s89 = sphi 0, %s86
      %s90 = sphi 0, %s89
      %s106 = sphi 0, %s90
      %s114 = sphi 0, %s116
      %s117 = sphi 0, %s114
      %s118 = sphi 0, %s117
      %s134 = sphi 0, %s118
    $region4: #{tpu_custom_call.1} parent=1 // loop_header_branch
      %15 = sbr.rel (%p13) target = $region8
    $region5: #{tpu_custom_call.1} parent=1 // loop_body
      %s17 = ssub.s32 %s12, 1
      %s18 = ssub.s32 %s12, 2
      %s25 = sadd.s32 1, %s20
      %p26 = scmp.ge.s32.totalorder %s25, 1
      %s27 = scalar_select %p26, 0, %s25
      %s28 = sadd.s32 1, %s19
      %s29 = scalar_select %p26, %s28, %s19
      %p30 = scmp.ge.s32.totalorder %s29, 2
      %s31 = scalar_select %p30, 0, %s29
      %s32 = ssub.s32 %s20, %s27
      %p33 = scmp.eq.s32.totalorder %s32, 0
      %s35 = sadd.s32 %s34, 1
      %s36 = scalar_select %p33, %s34, %s35
      %p39 = pneg %p33
      %p40 = scmp.eq.s32.totalorder %s12, 1
      %p41 = por %p39, %p40
      %p42 = scmp.ne.s32.totalorder %s34, %s37
      %p43 = scmp.eq.s32.totalorder %s12, 0
      %p44 = por %p42, %p43
      %p45 = scmp.ne.s32.totalorder %s34, %s37
      %p46 = scmp.eq.s32.totalorder %s17, 1
      %p47 = por %p45, %p46
      %p48 = scmp.ne.s32.totalorder %s37, %s38
      %p49 = scmp.eq.s32.totalorder %s17, 0
      %p50 = por %p48, %p49
      %p51 = scmp.ne.s32.totalorder %s37, %s38
      %p52 = scmp.eq.s32.totalorder %s18, 1
      %p53 = por %p51, %p52
      %p55 = scmp.ne.s32.totalorder %s38, %s54
      %p56 = scmp.eq.s32.totalorder %s18, 0
      %p57 = por %p55, %p56
      %s58 = ssub.s32 %s20, %s27
      %p59 = scmp.eq.s32.totalorder %s58, 0
      %s61 = sadd.s32 %s60, 1
      %s62 = scalar_select %p59, %s60, %s61
      %p65 = pneg %p59
      %p66 = scmp.eq.s32.totalorder %s12, 1
      %p67 = por %p65, %p66
      %p68 = scmp.ne.s32.totalorder %s60, %s63
      %p69 = scmp.eq.s32.totalorder %s12, 0
      %p70 = por %p68, %p69
      %p71 = scmp.ne.s32.totalorder %s60, %s63
      %p72 = scmp.eq.s32.totalorder %s17, 1
      %p73 = por %p71, %p72
      %p74 = scmp.ne.s32.totalorder %s63, %s64
      %p75 = scmp.eq.s32.totalorder %s17, 0
      %p76 = por %p74, %p75
      %p77 = scmp.ne.s32.totalorder %s63, %s64
      %p78 = scmp.eq.s32.totalorder %s18, 1
      %p79 = por %p77, %p78
      %p81 = scmp.ne.s32.totalorder %s64, %s80
      %p82 = scmp.eq.s32.totalorder %s18, 0
      %p83 = por %p81, %p82
      %s84 = ssub.s32 %s19, %s31
      %p85 = scmp.eq.s32.totalorder %s84, 0
      %s87 = sadd.s32 %s86, 1
      %s88 = scalar_select %p85, %s86, %s87
      %p91 = pneg %p85
      %p92 = scmp.eq.s32.totalorder %s12, 1
      %p93 = por %p91, %p92
      %p94 = scmp.ne.s32.totalorder %s86, %s89
      %p95 = scmp.eq.s32.totalorder %s12, 0
      %p96 = por %p94, %p95
      %p97 = scmp.ne.s32.totalorder %s86, %s89
      %p98 = scmp.eq.s32.totalorder %s17, 1
      %p99 = por %p97, %p98
      %p100 = scmp.ne.s32.totalorder %s89, %s90
      %p101 = scmp.eq.s32.totalorder %s17, 0
      %p102 = por %p100, %p101
      %p103 = scmp.ne.s32.totalorder %s89, %s90
      %p104 = scmp.eq.s32.totalorder %s18, 1
      %p105 = por %p103, %p104
      %p107 = scmp.ne.s32.totalorder %s90, %s106
      %p108 = scmp.eq.s32.totalorder %s18, 0
      %p109 = por %p107, %p108
      %s110 = ssub.s32 %s20, %s27
      %s111 = ssub.s32 %s19, %s31
      %s112 = sor.u32 %s110, %s111
      %p113 = scmp.eq.s32.totalorder %s112, 0
      %s115 = sadd.s32 %s114, 1
      %s116 = scalar_select %p113, %s114, %s115
      %p119 = pneg %p113
      %p120 = scmp.eq.s32.totalorder %s12, 1
      %p121 = por %p119, %p120
      %p122 = scmp.ne.s32.totalorder %s114, %s117
      %p123 = scmp.eq.s32.totalorder %s12, 0
      %p124 = por %p122, %p123
      %p125 = scmp.ne.s32.totalorder %s114, %s117
      %p126 = scmp.eq.s32.totalorder %s17, 1
      %p127 = por %p125, %p126
      %p128 = scmp.ne.s32.totalorder %s117, %s118
      %p129 = scmp.eq.s32.totalorder %s17, 0
      %p130 = por %p128, %p129
      %p131 = scmp.ne.s32.totalorder %s117, %s118
      %p132 = scmp.eq.s32.totalorder %s18, 1
      %p133 = por %p131, %p132
      %p135 = scmp.ne.s32.totalorder %s118, %s134
      %p136 = scmp.eq.s32.totalorder %s18, 0
      %p137 = por %p135, %p136
      %p138 = scmp.le.s32.totalorder 1, %s12
      %p139 = scmp.lt.s32.totalorder %s12, 3
      %p140 = pnand %p138, %p139
      %p141 = pneg %p140
      // Predicated region
      $region9: #{tpu_custom_call.1} parent=5 // pred_check
        _
      $region10: #{tpu_custom_call.1} parent=5 // pred_check_branch
        %143 = sbr.rel (%p140) target = $region12
      $region11: #{tpu_custom_call.1} parent=5 // pred_region
        %s144 = ssub.s32 %s12, 1
        // Predicated region
        $region13: #{tpu_custom_call.1} parent=11 // pred_check
          %p145 = pneg %p50
        $region14: #{tpu_custom_call.1} parent=11 // pred_check_branch
          %147 = sbr.rel (%p145) target = $region16
        $region15: #{tpu_custom_call.1} parent=11 // pred_region
          %p148 = scmp.lt.s32.totalorder %s22, 0
          %s149 = scalar_select %p148, %s22, 0
          %s150 = smul.addr %s149, 48
          %s151 = smul.addr %s150, 8
          %s152 = scalar_lea.vmem %s0, %s151
        $region16: #{tpu_custom_call.1} parent=11 // pred_fallthru
          _
        // Predicated region
        $region17: #{tpu_custom_call.1} parent=11 // pred_check
          %p153 = pneg %p76
        $region18: #{tpu_custom_call.1} parent=11 // pred_check_branch
          %155 = sbr.rel (%p153) target = $region20
        $region19: #{tpu_custom_call.1} parent=11 // pred_region
          %p156 = scmp.lt.s32.totalorder %s22, 0
          %s157 = scalar_select %p156, %s22, 0
          %s158 = smul.addr %s157, 48
          %s159 = smul.addr %s158, 8
          %s160 = scalar_lea.vmem %s1, %s159
        $region20: #{tpu_custom_call.1} parent=11 // pred_fallthru
          _
      $region12: #{tpu_custom_call.1} parent=5 // pred_fallthru
        _
      %p161 = scmp.lt.s32.totalorder %s12, 2
      // Predicated region
      $region21: #{tpu_custom_call.1} parent=5 // pred_check
        %p162 = pneg %p161
      $region22: #{tpu_custom_call.1} parent=5 // pred_check_branch
        %164 = sbr.rel (%p162) target = $region24
      $region23: #{tpu_custom_call.1} parent=5 // pred_region
        // Predicated region
        $region25: #{tpu_custom_call.1} parent=23 // pred_check
          %p165 = pneg %p96
        $region26: #{tpu_custom_call.1} parent=23 // pred_check_branch
          %167 = sbr.rel (%p165) target = $region28
        $region27: #{tpu_custom_call.1} parent=23 // pred_region
          %s168 = sand.u32 %s86, 1
          %s169 = scalar_lea.sflag [#allocation3], %s168
          %s170 = sand.u32 %s86, 1
          %s171 = smul.addr %s170, 3456
          %s172 = scalar_lea.vmem [#allocation2], %s171
          %s173 = smul.u32 144, %s19
          %s175 = ssub.s32 55296, 55296
          %176 = vsyncadd %s169, %s175
          %s177 = smul.addr %s173, 3
          %s178 = smul.addr %s177, 128
          %s179 = scalar_lea.hbm %s2, %s178
          %s180 = sshll.u32 %s172, 4
          %s181 = int_to_ptr.vmem [resolvable:$true] %s180
          %186 = dma.hbm_to_vmem [thread:$0]  %s179, 55296, %s181, %s169, 384, 384, 24
        $region28: #{tpu_custom_call.1} parent=23 // pred_fallthru
          _
      $region24: #{tpu_custom_call.1} parent=5 // pred_fallthru
        _
      %p187 = scmp.le.s32.totalorder 1, %s12
      %p188 = scmp.lt.s32.totalorder %s12, 3
      %p189 = pnand %p187, %p188
      %p190 = pneg %p189
      // Predicated region
      $region29: #{tpu_custom_call.1} parent=5 // pred_check
        _
      $region30: #{tpu_custom_call.1} parent=5 // pred_check_branch
        %192 = sbr.rel (%p189) target = $region32
      $region31: #{tpu_custom_call.1} parent=5 // pred_region
        %s193 = ssub.s32 %s12, 1
        %s194 = sand.u32 %s89, 1
        %s195 = scalar_lea.sflag [#allocation3], %s194
        %s196 = sand.u32 %s89, 1
        %s197 = smul.addr %s196, 3456
        %s198 = scalar_lea.vmem [#allocation2], %s197
        // Predicated region
        $region33: #{tpu_custom_call.1} parent=31 // pred_check
          %p199 = pneg %p102
        $region34: #{tpu_custom_call.1} parent=31 // pred_check_branch
          %201 = sbr.rel (%p199) target = $region36
        $region35: #{tpu_custom_call.1} parent=31 // pred_region
          %202 = dma.done %s195, 55296
        $region36: #{tpu_custom_call.1} parent=31 // pred_fallthru
          _
        %p203 = scmp.lt.s32.totalorder %s22, 0
        %s204 = scalar_select %p203, %s22, 0
        %s205 = smul.addr %s204, 48
        %s206 = smul.addr %s205, 8
        %s207 = scalar_lea.vmem %s0, %s206
        %p208 = pneg %p50
        %p209 = pneg %p47
        %p210 = scmp.lt.s32.totalorder %s22, 0
        %s211 = scalar_select %p210, %s22, 0
        %s212 = smul.addr %s211, 48
        %s213 = smul.addr %s212, 8
        %s214 = scalar_lea.vmem %s1, %s213
        %p215 = pneg %p76
        %p216 = pneg %p73
        %s217 = sand.u32 %s89, 1
        %s218 = scalar_lea.sflag [#allocation3], %s217
        %s219 = sand.u32 %s89, 1
        %s220 = smul.addr %s219, 3456
        %s221 = scalar_lea.vmem [#allocation2], %s220
        %p222 = pneg %p102
        %p223 = pneg %p99
        %p224 = pneg %p130
        %p225 = pneg %p127
        %s226 = smul.u32 144, %s21
        %p227 = scmp.lt.s32.totalorder %s22, 0
        %s228 = scalar_select %p227, %s22, 0
        %p229 = scmp.lt.s32.totalorder %s226, 287
        %s230 = scalar_select %p229, %s226, 287
        %s231 = smul.addr %s228, 288
        %s232 = sadd.s32 %s230, %s231
        %s233 = smul.addr %s232, 8
        %s234 = scalar_lea.vmem %s3, %s233
        %p235 = scmp.lt.s32.totalorder %s22, 0
        %s236 = scalar_select %p235, %s22, 0
        %s237 = smul.addr %s236, 48
        %s238 = smul.addr %s237, 8
        %s239 = scalar_lea.vmem %s0, %s238
        %p240 = scmp.lt.s32.totalorder %s22, 0
        %s241 = scalar_select %p240, %s22, 0
        %s242 = smul.addr %s241, 48
        %s243 = smul.addr %s242, 8
        %s244 = scalar_lea.vmem %s1, %s243
        %s245 = smul.u32 144, %s21
        %s246 = smul.u32 144, %s21
        %p247 = scmp.lt.s32.totalorder %s22, 0
        %s248 = scalar_select %p247, %s22, 0
        %p249 = scmp.lt.s32.totalorder %s246, 287
        %s250 = scalar_select %p249, %s246, 287
        %s251 = smul.addr %s248, 288
        %s252 = sadd.s32 %s250, %s251
        %s253 = smul.addr %s252, 8
        %s254 = scalar_lea.vmem %s3, %s253
        %s255 = smul.u32 144, %s21
        %v256 = vld [vmem:[%s239] sm:$0xff]
        %v257 = vld [vmem:[%s239 + $0x8] sm:$0xff]
        %v258 = vld [vmem:[%s239 + $0x10] sm:$0xff]
        %v259 = vld [vmem:[%s239 + $0x18] sm:$0xff]
        %v260 = vld [vmem:[%s239 + $0x20] sm:$0xff]
        %v261 = vld [vmem:[%s239 + $0x28] sm:$0xff]
        %v262 = vld [vmem:[%s239 + $0x30] sm:$0xff]
        %v263 = vld [vmem:[%s239 + $0x38] sm:$0xff]
        %v264 = vld [vmem:[%s239 + $0x40] sm:$0xff]
        %v265 = vld [vmem:[%s239 + $0x48] sm:$0xff]
        %v266 = vld [vmem:[%s239 + $0x50] sm:$0xff]
        %v267 = vld [vmem:[%s239 + $0x58] sm:$0xff]
        %v268 = vld [vmem:[%s239 + $0x60] sm:$0xff]
        %v269 = vld [vmem:[%s239 + $0x68] sm:$0xff]
        %v270 = vld [vmem:[%s239 + $0x70] sm:$0xff]
        %v271 = vld [vmem:[%s239 + $0x78] sm:$0xff]
        %v272 = vld [vmem:[%s239 + $0x80] sm:$0xff]
        %v273 = vld [vmem:[%s239 + $0x88] sm:$0xff]
        %v274 = vld [vmem:[%s239 + $0x90] sm:$0xff]
        %v275 = vld [vmem:[%s239 + $0x98] sm:$0xff]
        %v276 = vld [vmem:[%s239 + $0xa0] sm:$0xff]
        %v277 = vld [vmem:[%s239 + $0xa8] sm:$0xff]
        %v278 = vld [vmem:[%s239 + $0xb0] sm:$0xff]
        %v279 = vld [vmem:[%s239 + $0xb8] sm:$0xff]
        %v280 = vld [vmem:[%s239 + $0xc0] sm:$0xff]
        %v281 = vld [vmem:[%s239 + $0xc8] sm:$0xff]
        %v282 = vld [vmem:[%s239 + $0xd0] sm:$0xff]
        %v283 = vld [vmem:[%s239 + $0xd8] sm:$0xff]
        %v284 = vld [vmem:[%s239 + $0xe0] sm:$0xff]
        %v285 = vld [vmem:[%s239 + $0xe8] sm:$0xff]
        %v286 = vld [vmem:[%s239 + $0xf0] sm:$0xff]
        %v287 = vld [vmem:[%s239 + $0xf8] sm:$0xff]
        %v288 = vld [vmem:[%s239 + $0x100] sm:$0xff]
        %v289 = vld [vmem:[%s239 + $0x108] sm:$0xff]
        %v290 = vld [vmem:[%s239 + $0x110] sm:$0xff]
        %v291 = vld [vmem:[%s239 + $0x118] sm:$0xff]
        %v292 = vld [vmem:[%s239 + $0x120] sm:$0xff]
        %v293 = vld [vmem:[%s239 + $0x128] sm:$0xff]
        %v294 = vld [vmem:[%s239 + $0x130] sm:$0xff]
        %v295 = vld [vmem:[%s239 + $0x138] sm:$0xff]
        %v296 = vld [vmem:[%s239 + $0x140] sm:$0xff]
        %v297 = vld [vmem:[%s239 + $0x148] sm:$0xff]
        %v298 = vld [vmem:[%s239 + $0x150] sm:$0xff]
        %v299 = vld [vmem:[%s239 + $0x158] sm:$0xff]
        %v300 = vld [vmem:[%s239 + $0x160] sm:$0xff]
        %v301 = vld [vmem:[%s239 + $0x168] sm:$0xff]
        %v302 = vld [vmem:[%s239 + $0x170] sm:$0xff]
        %v303 = vld [vmem:[%s239 + $0x178] sm:$0xff]
        %v304 = vld [vmem:[%s244] sm:$0xff]
        %v305 = vld [vmem:[%s244 + $0x8] sm:$0xff]
        %v306 = vld [vmem:[%s244 + $0x10] sm:$0xff]
        %v307 = vld [vmem:[%s244 + $0x18] sm:$0xff]
        %v308 = vld [vmem:[%s244 + $0x20] sm:$0xff]
        %v309 = vld [vmem:[%s244 + $0x28] sm:$0xff]
        %v310 = vld [vmem:[%s244 + $0x30] sm:$0xff]
        %v311 = vld [vmem:[%s244 + $0x38] sm:$0xff]
        %v312 = vld [vmem:[%s244 + $0x40] sm:$0xff]
        %v313 = vld [vmem:[%s244 + $0x48] sm:$0xff]
        %v314 = vld [vmem:[%s244 + $0x50] sm:$0xff]
        %v315 = vld [vmem:[%s244 + $0x58] sm:$0xff]
        %v316 = vld [vmem:[%s244 + $0x60] sm:$0xff]
        %v317 = vld [vmem:[%s244 + $0x68] sm:$0xff]
        %v318 = vld [vmem:[%s244 + $0x70] sm:$0xff]
        %v319 = vld [vmem:[%s244 + $0x78] sm:$0xff]
        %v320 = vld [vmem:[%s244 + $0x80] sm:$0xff]
        %v321 = vld [vmem:[%s244 + $0x88] sm:$0xff]
        %v322 = vld [vmem:[%s244 + $0x90] sm:$0xff]
        %v323 = vld [vmem:[%s244 + $0x98] sm:$0xff]
        %v324 = vld [vmem:[%s244 + $0xa0] sm:$0xff]
        %v325 = vld [vmem:[%s244 + $0xa8] sm:$0xff]
        %v326 = vld [vmem:[%s244 + $0xb0] sm:$0xff]
        %v327 = vld [vmem:[%s244 + $0xb8] sm:$0xff]
        %v328 = vld [vmem:[%s244 + $0xc0] sm:$0xff]
        %v329 = vld [vmem:[%s244 + $0xc8] sm:$0xff]
        %v330 = vld [vmem:[%s244 + $0xd0] sm:$0xff]
        %v331 = vld [vmem:[%s244 + $0xd8] sm:$0xff]
        %v332 = vld [vmem:[%s244 + $0xe0] sm:$0xff]
        %v333 = vld [vmem:[%s244 + $0xe8] sm:$0xff]
        %v334 = vld [vmem:[%s244 + $0xf0] sm:$0xff]
        %v335 = vld [vmem:[%s244 + $0xf8] sm:$0xff]
        %v336 = vld [vmem:[%s244 + $0x100] sm:$0xff]
        %v337 = vld [vmem:[%s244 + $0x108] sm:$0xff]
        %v338 = vld [vmem:[%s244 + $0x110] sm:$0xff]
        %v339 = vld [vmem:[%s244 + $0x118] sm:$0xff]
        %v340 = vld [vmem:[%s244 + $0x120] sm:$0xff]
        %v341 = vld [vmem:[%s244 + $0x128] sm:$0xff]
        %v342 = vld [vmem:[%s244 + $0x130] sm:$0xff]
        %v343 = vld [vmem:[%s244 + $0x138] sm:$0xff]
        %v344 = vld [vmem:[%s244 + $0x140] sm:$0xff]
        %v345 = vld [vmem:[%s244 + $0x148] sm:$0xff]
        %v346 = vld [vmem:[%s244 + $0x150] sm:$0xff]
        %v347 = vld [vmem:[%s244 + $0x158] sm:$0xff]
        %v348 = vld [vmem:[%s244 + $0x160] sm:$0xff]
        %v349 = vld [vmem:[%s244 + $0x168] sm:$0xff]
        %v350 = vld [vmem:[%s244 + $0x170] sm:$0xff]
        %v351 = vld [vmem:[%s244 + $0x178] sm:$0xff]
        %v352 = vadd.f32 %v256, %v304
        %v353 = vadd.f32 %v257, %v305
        %v354 = vadd.f32 %v258, %v306
        %v355 = vadd.f32 %v259, %v307
        %v356 = vadd.f32 %v260, %v308
        %v357 = vadd.f32 %v261, %v309
        %v358 = vadd.f32 %v262, %v310
        %v359 = vadd.f32 %v263, %v311
        %v360 = vadd.f32 %v264, %v312
        %v361 = vadd.f32 %v265, %v313
        %v362 = vadd.f32 %v266, %v314
        %v363 = vadd.f32 %v267, %v315
        %v364 = vadd.f32 %v268, %v316
        %v365 = vadd.f32 %v269, %v317
        %v366 = vadd.f32 %v270, %v318
        %v367 = vadd.f32 %v271, %v319
        %v368 = vadd.f32 %v272, %v320
        %v369 = vadd.f32 %v273, %v321
        %v370 = vadd.f32 %v274, %v322
        %v371 = vadd.f32 %v275, %v323
        %v372 = vadd.f32 %v276, %v324
        %v373 = vadd.f32 %v277, %v325
        %v374 = vadd.f32 %v278, %v326
        %v375 = vadd.f32 %v279, %v327
        %v376 = vadd.f32 %v280, %v328
        %v377 = vadd.f32 %v281, %v329
        %v378 = vadd.f32 %v282, %v330
        %v379 = vadd.f32 %v283, %v331
        %v380 = vadd.f32 %v284, %v332
        %v381 = vadd.f32 %v285, %v333
        %v382 = vadd.f32 %v286, %v334
        %v383 = vadd.f32 %v287, %v335
        %v384 = vadd.f32 %v288, %v336
        %v385 = vadd.f32 %v289, %v337
        %v386 = vadd.f32 %v290, %v338
        %v387 = vadd.f32 %v291, %v339
        %v388 = vadd.f32 %v292, %v340
        %v389 = vadd.f32 %v293, %v341
        %v390 = vadd.f32 %v294, %v342
        %v391 = vadd.f32 %v295, %v343
        %v392 = vadd.f32 %v296, %v344
        %v393 = vadd.f32 %v297, %v345
        %v394 = vadd.f32 %v298, %v346
        %v395 = vadd.f32 %v299, %v347
        %v396 = vadd.f32 %v300, %v348
        %v397 = vadd.f32 %v301, %v349
        %v398 = vadd.f32 %v302, %v350
        %v399 = vadd.f32 %v303, %v351
        %v400 = vld [vmem:[%s198] sm:$0xff]
        %v401 = vld [vmem:[%s198 + $0x8] sm:$0xff]
        %v402 = vld [vmem:[%s198 + $0x10] sm:$0xff]
        %v403 = vld [vmem:[%s198 + $0x18] sm:$0xff]
        %v404 = vld [vmem:[%s198 + $0x20] sm:$0xff]
        %v405 = vld [vmem:[%s198 + $0x28] sm:$0xff]
        %v406 = vld [vmem:[%s198 + $0x30] sm:$0xff]
        %v407 = vld [vmem:[%s198 + $0x38] sm:$0xff]
        %v408 = vld [vmem:[%s198 + $0x40] sm:$0xff]
        %v409 = vld [vmem:[%s198 + $0x48] sm:$0xff]
        %v410 = vld [vmem:[%s198 + $0x50] sm:$0xff]
        %v411 = vld [vmem:[%s198 + $0x58] sm:$0xff]
        %v412 = vld [vmem:[%s198 + $0x60] sm:$0xff]
        %v413 = vld [vmem:[%s198 + $0x68] sm:$0xff]
        %v414 = vld [vmem:[%s198 + $0x70] sm:$0xff]
        %v415 = vld [vmem:[%s198 + $0x78] sm:$0xff]
        %v416 = vld [vmem:[%s198 + $0x80] sm:$0xff]
        %v417 = vld [vmem:[%s198 + $0x88] sm:$0xff]
        %v418 = vld [vmem:[%s198 + $0x90] sm:$0xff]
        %v419 = vld [vmem:[%s198 + $0x98] sm:$0xff]
        %v420 = vld [vmem:[%s198 + $0xa0] sm:$0xff]
        %v421 = vld [vmem:[%s198 + $0xa8] sm:$0xff]
        %v422 = vld [vmem:[%s198 + $0xb0] sm:$0xff]
        %v423 = vld [vmem:[%s198 + $0xb8] sm:$0xff]
        %v424 = vld [vmem:[%s198 + $0xc0] sm:$0xff]
        %v425 = vld [vmem:[%s198 + $0xc8] sm:$0xff]
        %v426 = vld [vmem:[%s198 + $0xd0] sm:$0xff]
        %v427 = vld [vmem:[%s198 + $0xd8] sm:$0xff]
        %v428 = vld [vmem:[%s198 + $0xe0] sm:$0xff]
        %v429 = vld [vmem:[%s198 + $0xe8] sm:$0xff]
        %v430 = vld [vmem:[%s198 + $0xf0] sm:$0xff]
        %v431 = vld [vmem:[%s198 + $0xf8] sm:$0xff]
        %v432 = vld [vmem:[%s198 + $0x100] sm:$0xff]
        %v433 = vld [vmem:[%s198 + $0x108] sm:$0xff]
        %v434 = vld [vmem:[%s198 + $0x110] sm:$0xff]
        %v435 = vld [vmem:[%s198 + $0x118] sm:$0xff]
        %v436 = vld [vmem:[%s198 + $0x120] sm:$0xff]
        %v437 = vld [vmem:[%s198 + $0x128] sm:$0xff]
        %v438 = vld [vmem:[%s198 + $0x130] sm:$0xff]
        %v439 = vld [vmem:[%s198 + $0x138] sm:$0xff]
        %v440 = vld [vmem:[%s198 + $0x140] sm:$0xff]
        %v441 = vld [vmem:[%s198 + $0x148] sm:$0xff]
        %v442 = vld [vmem:[%s198 + $0x150] sm:$0xff]
        %v443 = vld [vmem:[%s198 + $0x158] sm:$0xff]
        %v444 = vld [vmem:[%s198 + $0x160] sm:$0xff]
        %v445 = vld [vmem:[%s198 + $0x168] sm:$0xff]
        %v446 = vld [vmem:[%s198 + $0x170] sm:$0xff]
        %v447 = vld [vmem:[%s198 + $0x178] sm:$0xff]
        %v448 = vld [vmem:[%s198 + $0x180] sm:$0xff]
        %v449 = vld [vmem:[%s198 + $0x188] sm:$0xff]
        %v450 = vld [vmem:[%s198 + $0x190] sm:$0xff]
        %v451 = vld [vmem:[%s198 + $0x198] sm:$0xff]
        %v452 = vld [vmem:[%s198 + $0x1a0] sm:$0xff]
        %v453 = vld [vmem:[%s198 + $0x1a8] sm:$0xff]
        %v454 = vld [vmem:[%s198 + $0x1b0] sm:$0xff]
        %v455 = vld [vmem:[%s198 + $0x1b8] sm:$0xff]
        %v456 = vld [vmem:[%s198 + $0x1c0] sm:$0xff]
        %v457 = vld [vmem:[%s198 + $0x1c8] sm:$0xff]
        %v458 = vld [vmem:[%s198 + $0x1d0] sm:$0xff]
        %v459 = vld [vmem:[%s198 + $0x1d8] sm:$0xff]
        %v460 = vld [vmem:[%s198 + $0x1e0] sm:$0xff]
        %v461 = vld [vmem:[%s198 + $0x1e8] sm:$0xff]
        %v462 = vld [vmem:[%s198 + $0x1f0] sm:$0xff]
        %v463 = vld [vmem:[%s198 + $0x1f8] sm:$0xff]
        %v464 = vld [vmem:[%s198 + $0x200] sm:$0xff]
        %v465 = vld [vmem:[%s198 + $0x208] sm:$0xff]
        %v466 = vld [vmem:[%s198 + $0x210] sm:$0xff]
        %v467 = vld [vmem:[%s198 + $0x218] sm:$0xff]
        %v468 = vld [vmem:[%s198 + $0x220] sm:$0xff]
        %v469 = vld [vmem:[%s198 + $0x228] sm:$0xff]
        %v470 = vld [vmem:[%s198 + $0x230] sm:$0xff]
        %v471 = vld [vmem:[%s198 + $0x238] sm:$0xff]
        %v472 = vld [vmem:[%s198 + $0x240] sm:$0xff]
        %v473 = vld [vmem:[%s198 + $0x248] sm:$0xff]
        %v474 = vld [vmem:[%s198 + $0x250] sm:$0xff]
        %v475 = vld [vmem:[%s198 + $0x258] sm:$0xff]
        %v476 = vld [vmem:[%s198 + $0x260] sm:$0xff]
        %v477 = vld [vmem:[%s198 + $0x268] sm:$0xff]
        %v478 = vld [vmem:[%s198 + $0x270] sm:$0xff]
        %v479 = vld [vmem:[%s198 + $0x278] sm:$0xff]
        %v480 = vld [vmem:[%s198 + $0x280] sm:$0xff]
        %v481 = vld [vmem:[%s198 + $0x288] sm:$0xff]
        %v482 = vld [vmem:[%s198 + $0x290] sm:$0xff]
        %v483 = vld [vmem:[%s198 + $0x298] sm:$0xff]
        %v484 = vld [vmem:[%s198 + $0x2a0] sm:$0xff]
        %v485 = vld [vmem:[%s198 + $0x2a8] sm:$0xff]
        %v486 = vld [vmem:[%s198 + $0x2b0] sm:$0xff]
        %v487 = vld [vmem:[%s198 + $0x2b8] sm:$0xff]
        %v488 = vld [vmem:[%s198 + $0x2c0] sm:$0xff]
        %v489 = vld [vmem:[%s198 + $0x2c8] sm:$0xff]
        %v490 = vld [vmem:[%s198 + $0x2d0] sm:$0xff]
        %v491 = vld [vmem:[%s198 + $0x2d8] sm:$0xff]
        %v492 = vld [vmem:[%s198 + $0x2e0] sm:$0xff]
        %v493 = vld [vmem:[%s198 + $0x2e8] sm:$0xff]
        %v494 = vld [vmem:[%s198 + $0x2f0] sm:$0xff]
        %v495 = vld [vmem:[%s198 + $0x2f8] sm:$0xff]
        %v496 = vld [vmem:[%s198 + $0x300] sm:$0xff]
        %v497 = vld [vmem:[%s198 + $0x308] sm:$0xff]
        %v498 = vld [vmem:[%s198 + $0x310] sm:$0xff]
        %v499 = vld [vmem:[%s198 + $0x318] sm:$0xff]
        %v500 = vld [vmem:[%s198 + $0x320] sm:$0xff]
        %v501 = vld [vmem:[%s198 + $0x328] sm:$0xff]
        %v502 = vld [vmem:[%s198 + $0x330] sm:$0xff]
        %v503 = vld [vmem:[%s198 + $0x338] sm:$0xff]
        %v504 = vld [vmem:[%s198 + $0x340] sm:$0xff]
        %v505 = vld [vmem:[%s198 + $0x348] sm:$0xff]
        %v506 = vld [vmem:[%s198 + $0x350] sm:$0xff]
        %v507 = vld [vmem:[%s198 + $0x358] sm:$0xff]
        %v508 = vld [vmem:[%s198 + $0x360] sm:$0xff]
        %v509 = vld [vmem:[%s198 + $0x368] sm:$0xff]
        %v510 = vld [vmem:[%s198 + $0x370] sm:$0xff]
        %v511 = vld [vmem:[%s198 + $0x378] sm:$0xff]
        %v512 = vld [vmem:[%s198 + $0x380] sm:$0xff]
        %v513 = vld [vmem:[%s198 + $0x388] sm:$0xff]
        %v514 = vld [vmem:[%s198 + $0x390] sm:$0xff]
        %v515 = vld [vmem:[%s198 + $0x398] sm:$0xff]
        %v516 = vld [vmem:[%s198 + $0x3a0] sm:$0xff]
        %v517 = vld [vmem:[%s198 + $0x3a8] sm:$0xff]
        %v518 = vld [vmem:[%s198 + $0x3b0] sm:$0xff]
        %v519 = vld [vmem:[%s198 + $0x3b8] sm:$0xff]
        %v520 = vld [vmem:[%s198 + $0x3c0] sm:$0xff]
        %v521 = vld [vmem:[%s198 + $0x3c8] sm:$0xff]
        %v522 = vld [vmem:[%s198 + $0x3d0] sm:$0xff]
        %v523 = vld [vmem:[%s198 + $0x3d8] sm:$0xff]
        %v524 = vld [vmem:[%s198 + $0x3e0] sm:$0xff]
        %v525 = vld [vmem:[%s198 + $0x3e8] sm:$0xff]
        %v526 = vld [vmem:[%s198 + $0x3f0] sm:$0xff]
        %v527 = vld [vmem:[%s198 + $0x3f8] sm:$0xff]
        %v528 = vld [vmem:[%s198 + $0x400] sm:$0xff]
        %v529 = vld [vmem:[%s198 + $0x408] sm:$0xff]
        %v530 = vld [vmem:[%s198 + $0x410] sm:$0xff]
        %v531 = vld [vmem:[%s198 + $0x418] sm:$0xff]
        %v532 = vld [vmem:[%s198 + $0x420] sm:$0xff]
        %v533 = vld [vmem:[%s198 + $0x428] sm:$0xff]
        %v534 = vld [vmem:[%s198 + $0x430] sm:$0xff]
        %v535 = vld [vmem:[%s198 + $0x438] sm:$0xff]
        %v536 = vld [vmem:[%s198 + $0x440] sm:$0xff]
        %v537 = vld [vmem:[%s198 + $0x448] sm:$0xff]
        %v538 = vld [vmem:[%s198 + $0x450] sm:$0xff]
        %v539 = vld [vmem:[%s198 + $0x458] sm:$0xff]
        %v540 = vld [vmem:[%s198 + $0x460] sm:$0xff]
        %v541 = vld [vmem:[%s198 + $0x468] sm:$0xff]
        %v542 = vld [vmem:[%s198 + $0x470] sm:$0xff]
        %v543 = vld [vmem:[%s198 + $0x478] sm:$0xff]
        %v544 = vld [vmem:[%s198 + $0x480] sm:$0xff]
        %v545 = vld [vmem:[%s198 + $0x488] sm:$0xff]
        %v546 = vld [vmem:[%s198 + $0x490] sm:$0xff]
        %v547 = vld [vmem:[%s198 + $0x498] sm:$0xff]
        %v548 = vld [vmem:[%s198 + $0x4a0] sm:$0xff]
        %v549 = vld [vmem:[%s198 + $0x4a8] sm:$0xff]
        %v550 = vld [vmem:[%s198 + $0x4b0] sm:$0xff]
        %v551 = vld [vmem:[%s198 + $0x4b8] sm:$0xff]
        %v552 = vld [vmem:[%s198 + $0x4c0] sm:$0xff]
        %v553 = vld [vmem:[%s198 + $0x4c8] sm:$0xff]
        %v554 = vld [vmem:[%s198 + $0x4d0] sm:$0xff]
        %v555 = vld [vmem:[%s198 + $0x4d8] sm:$0xff]
        %v556 = vld [vmem:[%s198 + $0x4e0] sm:$0xff]
        %v557 = vld [vmem:[%s198 + $0x4e8] sm:$0xff]
        %v558 = vld [vmem:[%s198 + $0x4f0] sm:$0xff]
        %v559 = vld [vmem:[%s198 + $0x4f8] sm:$0xff]
        %v560 = vld [vmem:[%s198 + $0x500] sm:$0xff]
        %v561 = vld [vmem:[%s198 + $0x508] sm:$0xff]
        %v562 = vld [vmem:[%s198 + $0x510] sm:$0xff]
        %v563 = vld [vmem:[%s198 + $0x518] sm:$0xff]
        %v564 = vld [vmem:[%s198 + $0x520] sm:$0xff]
        %v565 = vld [vmem:[%s198 + $0x528] sm:$0xff]
        %v566 = vld [vmem:[%s198 + $0x530] sm:$0xff]
        %v567 = vld [vmem:[%s198 + $0x538] sm:$0xff]
        %v568 = vld [vmem:[%s198 + $0x540] sm:$0xff]
        %v569 = vld [vmem:[%s198 + $0x548] sm:$0xff]
        %v570 = vld [vmem:[%s198 + $0x550] sm:$0xff]
        %v571 = vld [vmem:[%s198 + $0x558] sm:$0xff]
        %v572 = vld [vmem:[%s198 + $0x560] sm:$0xff]
        %v573 = vld [vmem:[%s198 + $0x568] sm:$0xff]
        %v574 = vld [vmem:[%s198 + $0x570] sm:$0xff]
        %v575 = vld [vmem:[%s198 + $0x578] sm:$0xff]
        %v576 = vld [vmem:[%s198 + $0x580] sm:$0xff]
        %v577 = vld [vmem:[%s198 + $0x588] sm:$0xff]
        %v578 = vld [vmem:[%s198 + $0x590] sm:$0xff]
        %v579 = vld [vmem:[%s198 + $0x598] sm:$0xff]
        %v580 = vld [vmem:[%s198 + $0x5a0] sm:$0xff]
        %v581 = vld [vmem:[%s198 + $0x5a8] sm:$0xff]
        %v582 = vld [vmem:[%s198 + $0x5b0] sm:$0xff]
        %v583 = vld [vmem:[%s198 + $0x5b8] sm:$0xff]
        %v584 = vld [vmem:[%s198 + $0x5c0] sm:$0xff]
        %v585 = vld [vmem:[%s198 + $0x5c8] sm:$0xff]
        %v586 = vld [vmem:[%s198 + $0x5d0] sm:$0xff]
        %v587 = vld [vmem:[%s198 + $0x5d8] sm:$0xff]
        %v588 = vld [vmem:[%s198 + $0x5e0] sm:$0xff]
        %v589 = vld [vmem:[%s198 + $0x5e8] sm:$0xff]
        %v590 = vld [vmem:[%s198 + $0x5f0] sm:$0xff]
        %v591 = vld [vmem:[%s198 + $0x5f8] sm:$0xff]
        %v592 = vld [vmem:[%s198 + $0x600] sm:$0xff]
        %v593 = vld [vmem:[%s198 + $0x608] sm:$0xff]
        %v594 = vld [vmem:[%s198 + $0x610] sm:$0xff]
        %v595 = vld [vmem:[%s198 + $0x618] sm:$0xff]
        %v596 = vld [vmem:[%s198 + $0x620] sm:$0xff]
        %v597 = vld [vmem:[%s198 + $0x628] sm:$0xff]
        %v598 = vld [vmem:[%s198 + $0x630] sm:$0xff]
        %v599 = vld [vmem:[%s198 + $0x638] sm:$0xff]
        %v600 = vld [vmem:[%s198 + $0x640] sm:$0xff]
        %v601 = vld [vmem:[%s198 + $0x648] sm:$0xff]
        %v602 = vld [vmem:[%s198 + $0x650] sm:$0xff]
        %v603 = vld [vmem:[%s198 + $0x658] sm:$0xff]
        %v604 = vld [vmem:[%s198 + $0x660] sm:$0xff]
        %v605 = vld [vmem:[%s198 + $0x668] sm:$0xff]
        %v606 = vld [vmem:[%s198 + $0x670] sm:$0xff]
        %v607 = vld [vmem:[%s198 + $0x678] sm:$0xff]
        %v608 = vld [vmem:[%s198 + $0x680] sm:$0xff]
        %v609 = vld [vmem:[%s198 + $0x688] sm:$0xff]
        %v610 = vld [vmem:[%s198 + $0x690] sm:$0xff]
        %v611 = vld [vmem:[%s198 + $0x698] sm:$0xff]
        %v612 = vld [vmem:[%s198 + $0x6a0] sm:$0xff]
        %v613 = vld [vmem:[%s198 + $0x6a8] sm:$0xff]
        %v614 = vld [vmem:[%s198 + $0x6b0] sm:$0xff]
        %v615 = vld [vmem:[%s198 + $0x6b8] sm:$0xff]
        %v616 = vld [vmem:[%s198 + $0x6c0] sm:$0xff]
        %v617 = vld [vmem:[%s198 + $0x6c8] sm:$0xff]
        %v618 = vld [vmem:[%s198 + $0x6d0] sm:$0xff]
        %v619 = vld [vmem:[%s198 + $0x6d8] sm:$0xff]
        %v620 = vld [vmem:[%s198 + $0x6e0] sm:$0xff]
        %v621 = vld [vmem:[%s198 + $0x6e8] sm:$0xff]
        %v622 = vld [vmem:[%s198 + $0x6f0] sm:$0xff]
        %v623 = vld [vmem:[%s198 + $0x6f8] sm:$0xff]
        %v624 = vld [vmem:[%s198 + $0x700] sm:$0xff]
        %v625 = vld [vmem:[%s198 + $0x708] sm:$0xff]
        %v626 = vld [vmem:[%s198 + $0x710] sm:$0xff]
        %v627 = vld [vmem:[%s198 + $0x718] sm:$0xff]
        %v628 = vld [vmem:[%s198 + $0x720] sm:$0xff]
        %v629 = vld [vmem:[%s198 + $0x728] sm:$0xff]
        %v630 = vld [vmem:[%s198 + $0x730] sm:$0xff]
        %v631 = vld [vmem:[%s198 + $0x738] sm:$0xff]
        %v632 = vld [vmem:[%s198 + $0x740] sm:$0xff]
        %v633 = vld [vmem:[%s198 + $0x748] sm:$0xff]
        %v634 = vld [vmem:[%s198 + $0x750] sm:$0xff]
        %v635 = vld [vmem:[%s198 + $0x758] sm:$0xff]
        %v636 = vld [vmem:[%s198 + $0x760] sm:$0xff]
        %v637 = vld [vmem:[%s198 + $0x768] sm:$0xff]
        %v638 = vld [vmem:[%s198 + $0x770] sm:$0xff]
        %v639 = vld [vmem:[%s198 + $0x778] sm:$0xff]
        %v640 = vld [vmem:[%s198 + $0x780] sm:$0xff]
        %v641 = vld [vmem:[%s198 + $0x788] sm:$0xff]
        %v642 = vld [vmem:[%s198 + $0x790] sm:$0xff]
        %v643 = vld [vmem:[%s198 + $0x798] sm:$0xff]
        %v644 = vld [vmem:[%s198 + $0x7a0] sm:$0xff]
        %v645 = vld [vmem:[%s198 + $0x7a8] sm:$0xff]
        %v646 = vld [vmem:[%s198 + $0x7b0] sm:$0xff]
        %v647 = vld [vmem:[%s198 + $0x7b8] sm:$0xff]
        %v648 = vld [vmem:[%s198 + $0x7c0] sm:$0xff]
        %v649 = vld [vmem:[%s198 + $0x7c8] sm:$0xff]
        %v650 = vld [vmem:[%s198 + $0x7d0] sm:$0xff]
        %v651 = vld [vmem:[%s198 + $0x7d8] sm:$0xff]
        %v652 = vld [vmem:[%s198 + $0x7e0] sm:$0xff]
        %v653 = vld [vmem:[%s198 + $0x7e8] sm:$0xff]
        %v654 = vld [vmem:[%s198 + $0x7f0] sm:$0xff]
        %v655 = vld [vmem:[%s198 + $0x7f8] sm:$0xff]
        %v656 = vld [vmem:[%s198 + $0x800] sm:$0xff]
        %v657 = vld [vmem:[%s198 + $0x808] sm:$0xff]
        %v658 = vld [vmem:[%s198 + $0x810] sm:$0xff]
        %v659 = vld [vmem:[%s198 + $0x818] sm:$0xff]
        %v660 = vld [vmem:[%s198 + $0x820] sm:$0xff]
        %v661 = vld [vmem:[%s198 + $0x828] sm:$0xff]
        %v662 = vld [vmem:[%s198 + $0x830] sm:$0xff]
        %v663 = vld [vmem:[%s198 + $0x838] sm:$0xff]
        %v664 = vld [vmem:[%s198 + $0x840] sm:$0xff]
        %v665 = vld [vmem:[%s198 + $0x848] sm:$0xff]
        %v666 = vld [vmem:[%s198 + $0x850] sm:$0xff]
        %v667 = vld [vmem:[%s198 + $0x858] sm:$0xff]
        %v668 = vld [vmem:[%s198 + $0x860] sm:$0xff]
        %v669 = vld [vmem:[%s198 + $0x868] sm:$0xff]
        %v670 = vld [vmem:[%s198 + $0x870] sm:$0xff]
        %v671 = vld [vmem:[%s198 + $0x878] sm:$0xff]
        %v672 = vld [vmem:[%s198 + $0x880] sm:$0xff]
        %v673 = vld [vmem:[%s198 + $0x888] sm:$0xff]
        %v674 = vld [vmem:[%s198 + $0x890] sm:$0xff]
        %v675 = vld [vmem:[%s198 + $0x898] sm:$0xff]
        %v676 = vld [vmem:[%s198 + $0x8a0] sm:$0xff]
        %v677 = vld [vmem:[%s198 + $0x8a8] sm:$0xff]
        %v678 = vld [vmem:[%s198 + $0x8b0] sm:$0xff]
        %v679 = vld [vmem:[%s198 + $0x8b8] sm:$0xff]
        %v680 = vld [vmem:[%s198 + $0x8c0] sm:$0xff]
        %v681 = vld [vmem:[%s198 + $0x8c8] sm:$0xff]
        %v682 = vld [vmem:[%s198 + $0x8d0] sm:$0xff]
        %v683 = vld [vmem:[%s198 + $0x8d8] sm:$0xff]
        %v684 = vld [vmem:[%s198 + $0x8e0] sm:$0xff]
        %v685 = vld [vmem:[%s198 + $0x8e8] sm:$0xff]
        %v686 = vld [vmem:[%s198 + $0x8f0] sm:$0xff]
        %v687 = vld [vmem:[%s198 + $0x8f8] sm:$0xff]
        %v688 = vld [vmem:[%s198 + $0x900] sm:$0xff]
        %v689 = vld [vmem:[%s198 + $0x908] sm:$0xff]
        %v690 = vld [vmem:[%s198 + $0x910] sm:$0xff]
        %v691 = vld [vmem:[%s198 + $0x918] sm:$0xff]
        %v692 = vld [vmem:[%s198 + $0x920] sm:$0xff]
        %v693 = vld [vmem:[%s198 + $0x928] sm:$0xff]
        %v694 = vld [vmem:[%s198 + $0x930] sm:$0xff]
        %v695 = vld [vmem:[%s198 + $0x938] sm:$0xff]
        %v696 = vld [vmem:[%s198 + $0x940] sm:$0xff]
        %v697 = vld [vmem:[%s198 + $0x948] sm:$0xff]
        %v698 = vld [vmem:[%s198 + $0x950] sm:$0xff]
        %v699 = vld [vmem:[%s198 + $0x958] sm:$0xff]
        %v700 = vld [vmem:[%s198 + $0x960] sm:$0xff]
        %v701 = vld [vmem:[%s198 + $0x968] sm:$0xff]
        %v702 = vld [vmem:[%s198 + $0x970] sm:$0xff]
        %v703 = vld [vmem:[%s198 + $0x978] sm:$0xff]
        %v704 = vld [vmem:[%s198 + $0x980] sm:$0xff]
        %v705 = vld [vmem:[%s198 + $0x988] sm:$0xff]
        %v706 = vld [vmem:[%s198 + $0x990] sm:$0xff]
        %v707 = vld [vmem:[%s198 + $0x998] sm:$0xff]
        %v708 = vld [vmem:[%s198 + $0x9a0] sm:$0xff]
        %v709 = vld [vmem:[%s198 + $0x9a8] sm:$0xff]
        %v710 = vld [vmem:[%s198 + $0x9b0] sm:$0xff]
        %v711 = vld [vmem:[%s198 + $0x9b8] sm:$0xff]
        %v712 = vld [vmem:[%s198 + $0x9c0] sm:$0xff]
        %v713 = vld [vmem:[%s198 + $0x9c8] sm:$0xff]
        %v714 = vld [vmem:[%s198 + $0x9d0] sm:$0xff]
        %v715 = vld [vmem:[%s198 + $0x9d8] sm:$0xff]
        %v716 = vld [vmem:[%s198 + $0x9e0] sm:$0xff]
        %v717 = vld [vmem:[%s198 + $0x9e8] sm:$0xff]
        %v718 = vld [vmem:[%s198 + $0x9f0] sm:$0xff]
        %v719 = vld [vmem:[%s198 + $0x9f8] sm:$0xff]
        %v720 = vld [vmem:[%s198 + $0xa00] sm:$0xff]
        %v721 = vld [vmem:[%s198 + $0xa08] sm:$0xff]
        %v722 = vld [vmem:[%s198 + $0xa10] sm:$0xff]
        %v723 = vld [vmem:[%s198 + $0xa18] sm:$0xff]
        %v724 = vld [vmem:[%s198 + $0xa20] sm:$0xff]
        %v725 = vld [vmem:[%s198 + $0xa28] sm:$0xff]
        %v726 = vld [vmem:[%s198 + $0xa30] sm:$0xff]
        %v727 = vld [vmem:[%s198 + $0xa38] sm:$0xff]
        %v728 = vld [vmem:[%s198 + $0xa40] sm:$0xff]
        %v729 = vld [vmem:[%s198 + $0xa48] sm:$0xff]
        %v730 = vld [vmem:[%s198 + $0xa50] sm:$0xff]
        %v731 = vld [vmem:[%s198 + $0xa58] sm:$0xff]
        %v732 = vld [vmem:[%s198 + $0xa60] sm:$0xff]
        %v733 = vld [vmem:[%s198 + $0xa68] sm:$0xff]
        %v734 = vld [vmem:[%s198 + $0xa70] sm:$0xff]
        %v735 = vld [vmem:[%s198 + $0xa78] sm:$0xff]
        %v736 = vld [vmem:[%s198 + $0xa80] sm:$0xff]
        %v737 = vld [vmem:[%s198 + $0xa88] sm:$0xff]
        %v738 = vld [vmem:[%s198 + $0xa90] sm:$0xff]
        %v739 = vld [vmem:[%s198 + $0xa98] sm:$0xff]
        %v740 = vld [vmem:[%s198 + $0xaa0] sm:$0xff]
        %v741 = vld [vmem:[%s198 + $0xaa8] sm:$0xff]
        %v742 = vld [vmem:[%s198 + $0xab0] sm:$0xff]
        %v743 = vld [vmem:[%s198 + $0xab8] sm:$0xff]
        %v744 = vld [vmem:[%s198 + $0xac0] sm:$0xff]
        %v745 = vld [vmem:[%s198 + $0xac8] sm:$0xff]
        %v746 = vld [vmem:[%s198 + $0xad0] sm:$0xff]
        %v747 = vld [vmem:[%s198 + $0xad8] sm:$0xff]
        %v748 = vld [vmem:[%s198 + $0xae0] sm:$0xff]
        %v749 = vld [vmem:[%s198 + $0xae8] sm:$0xff]
        %v750 = vld [vmem:[%s198 + $0xaf0] sm:$0xff]
        %v751 = vld [vmem:[%s198 + $0xaf8] sm:$0xff]
        %v752 = vld [vmem:[%s198 + $0xb00] sm:$0xff]
        %v753 = vld [vmem:[%s198 + $0xb08] sm:$0xff]
        %v754 = vld [vmem:[%s198 + $0xb10] sm:$0xff]
        %v755 = vld [vmem:[%s198 + $0xb18] sm:$0xff]
        %v756 = vld [vmem:[%s198 + $0xb20] sm:$0xff]
        %v757 = vld [vmem:[%s198 + $0xb28] sm:$0xff]
        %v758 = vld [vmem:[%s198 + $0xb30] sm:$0xff]
        %v759 = vld [vmem:[%s198 + $0xb38] sm:$0xff]
        %v760 = vld [vmem:[%s198 + $0xb40] sm:$0xff]
        %v761 = vld [vmem:[%s198 + $0xb48] sm:$0xff]
        %v762 = vld [vmem:[%s198 + $0xb50] sm:$0xff]
        %v763 = vld [vmem:[%s198 + $0xb58] sm:$0xff]
        %v764 = vld [vmem:[%s198 + $0xb60] sm:$0xff]
        %v765 = vld [vmem:[%s198 + $0xb68] sm:$0xff]
        %v766 = vld [vmem:[%s198 + $0xb70] sm:$0xff]
        %v767 = vld [vmem:[%s198 + $0xb78] sm:$0xff]
        %v768 = vld [vmem:[%s198 + $0xb80] sm:$0xff]
        %v769 = vld [vmem:[%s198 + $0xb88] sm:$0xff]
        %v770 = vld [vmem:[%s198 + $0xb90] sm:$0xff]
        %v771 = vld [vmem:[%s198 + $0xb98] sm:$0xff]
        %v772 = vld [vmem:[%s198 + $0xba0] sm:$0xff]
        %v773 = vld [vmem:[%s198 + $0xba8] sm:$0xff]
        %v774 = vld [vmem:[%s198 + $0xbb0] sm:$0xff]
        %v775 = vld [vmem:[%s198 + $0xbb8] sm:$0xff]
        %v776 = vld [vmem:[%s198 + $0xbc0] sm:$0xff]
        %v777 = vld [vmem:[%s198 + $0xbc8] sm:$0xff]
        %v778 = vld [vmem:[%s198 + $0xbd0] sm:$0xff]
        %v779 = vld [vmem:[%s198 + $0xbd8] sm:$0xff]
        %v780 = vld [vmem:[%s198 + $0xbe0] sm:$0xff]
        %v781 = vld [vmem:[%s198 + $0xbe8] sm:$0xff]
        %v782 = vld [vmem:[%s198 + $0xbf0] sm:$0xff]
        %v783 = vld [vmem:[%s198 + $0xbf8] sm:$0xff]
        %v784 = vld [vmem:[%s198 + $0xc00] sm:$0xff]
        %v785 = vld [vmem:[%s198 + $0xc08] sm:$0xff]
        %v786 = vld [vmem:[%s198 + $0xc10] sm:$0xff]
        %v787 = vld [vmem:[%s198 + $0xc18] sm:$0xff]
        %v788 = vld [vmem:[%s198 + $0xc20] sm:$0xff]
        %v789 = vld [vmem:[%s198 + $0xc28] sm:$0xff]
        %v790 = vld [vmem:[%s198 + $0xc30] sm:$0xff]
        %v791 = vld [vmem:[%s198 + $0xc38] sm:$0xff]
        %v792 = vld [vmem:[%s198 + $0xc40] sm:$0xff]
        %v793 = vld [vmem:[%s198 + $0xc48] sm:$0xff]
        %v794 = vld [vmem:[%s198 + $0xc50] sm:$0xff]
        %v795 = vld [vmem:[%s198 + $0xc58] sm:$0xff]
        %v796 = vld [vmem:[%s198 + $0xc60] sm:$0xff]
        %v797 = vld [vmem:[%s198 + $0xc68] sm:$0xff]
        %v798 = vld [vmem:[%s198 + $0xc70] sm:$0xff]
        %v799 = vld [vmem:[%s198 + $0xc78] sm:$0xff]
        %v800 = vld [vmem:[%s198 + $0xc80] sm:$0xff]
        %v801 = vld [vmem:[%s198 + $0xc88] sm:$0xff]
        %v802 = vld [vmem:[%s198 + $0xc90] sm:$0xff]
        %v803 = vld [vmem:[%s198 + $0xc98] sm:$0xff]
        %v804 = vld [vmem:[%s198 + $0xca0] sm:$0xff]
        %v805 = vld [vmem:[%s198 + $0xca8] sm:$0xff]
        %v806 = vld [vmem:[%s198 + $0xcb0] sm:$0xff]
        %v807 = vld [vmem:[%s198 + $0xcb8] sm:$0xff]
        %v808 = vld [vmem:[%s198 + $0xcc0] sm:$0xff]
        %v809 = vld [vmem:[%s198 + $0xcc8] sm:$0xff]
        %v810 = vld [vmem:[%s198 + $0xcd0] sm:$0xff]
        %v811 = vld [vmem:[%s198 + $0xcd8] sm:$0xff]
        %v812 = vld [vmem:[%s198 + $0xce0] sm:$0xff]
        %v813 = vld [vmem:[%s198 + $0xce8] sm:$0xff]
        %v814 = vld [vmem:[%s198 + $0xcf0] sm:$0xff]
        %v815 = vld [vmem:[%s198 + $0xcf8] sm:$0xff]
        %v816 = vld [vmem:[%s198 + $0xd00] sm:$0xff]
        %v817 = vld [vmem:[%s198 + $0xd08] sm:$0xff]
        %v818 = vld [vmem:[%s198 + $0xd10] sm:$0xff]
        %v819 = vld [vmem:[%s198 + $0xd18] sm:$0xff]
        %v820 = vld [vmem:[%s198 + $0xd20] sm:$0xff]
        %v821 = vld [vmem:[%s198 + $0xd28] sm:$0xff]
        %v822 = vld [vmem:[%s198 + $0xd30] sm:$0xff]
        %v823 = vld [vmem:[%s198 + $0xd38] sm:$0xff]
        %v824 = vld [vmem:[%s198 + $0xd40] sm:$0xff]
        %v825 = vld [vmem:[%s198 + $0xd48] sm:$0xff]
        %v826 = vld [vmem:[%s198 + $0xd50] sm:$0xff]
        %v827 = vld [vmem:[%s198 + $0xd58] sm:$0xff]
        %v828 = vld [vmem:[%s198 + $0xd60] sm:$0xff]
        %v829 = vld [vmem:[%s198 + $0xd68] sm:$0xff]
        %v830 = vld [vmem:[%s198 + $0xd70] sm:$0xff]
        %v831 = vld [vmem:[%s198 + $0xd78] sm:$0xff]
        %832 = vmatprep.subr.mxu0 0.0
        %833 = vmatpush1.msra.mxu0 %v352
        %834 = vmatprep.subr.mxu0 0.0
        %835 = vmatpush1.msra.mxu0 %v353
        %836 = vmatprep.subr.mxu0 0.0
        %837 = vmatpush1.msra.mxu0 %v354
        %838 = vmatprep.subr.mxu0 0.0
        %839 = vmatpush1.msra.mxu0 %v355
        %840 = vmatprep.subr.mxu0 0.0
        %841 = vmatpush1.msra.mxu0 %v356
        %842 = vmatprep.subr.mxu0 0.0
        %843 = vmatpush1.msra.mxu0 %v357
        %844 = vmatprep.subr.mxu0 0.0
        %845 = vmatpush1.msra.mxu0 %v358
        %846 = vmatprep.subr.mxu0 0.0
        %847 = vmatpush1.msra.mxu0 %v359
        %848 = vmatprep.subr.mxu0 0.0
        %849 = vmatpush1.msra.mxu0 %v360
        %850 = vmatprep.subr.mxu0 0.0
        %851 = vmatpush1.msra.mxu0 %v361
        %852 = vmatprep.subr.mxu0 0.0
        %853 = vmatpush1.msra.mxu0 %v362
        %854 = vmatprep.subr.mxu0 0.0
        %855 = vmatpush1.msra.mxu0 %v363
        %856 = vmatprep.subr.mxu0 0.0
        %857 = vmatpush1.msra.mxu0 %v364
        %858 = vmatprep.subr.mxu0 0.0
        %859 = vmatpush1.msra.mxu0 %v365
        %860 = vmatprep.subr.mxu0 0.0
        %861 = vmatpush1.msra.mxu0 %v366
        %862 = vmatprep.subr.mxu0 0.0
        %863 = vmatpush1.msra.mxu0 %v367
        %864 = vmatprep.subr.mxu0 0.0
        %865 = vmatpush1.msra.mxu0 %v368
        %866 = vmatprep.subr.mxu0 0.0
        %867 = vmatpush1.msra.mxu0 %v369
        %868 = vmatprep.subr.mxu0 0.0
        %869 = vmatpush1.msra.mxu0 %v370
        %870 = vmatprep.subr.mxu0 0.0
        %871 = vmatpush1.msra.mxu0 %v371
        %872 = vmatprep.subr.mxu0 0.0
        %873 = vmatpush1.msra.mxu0 %v372
        %874 = vmatprep.subr.mxu0 0.0
        %875 = vmatpush1.msra.mxu0 %v373
        %876 = vmatprep.subr.mxu0 0.0
        %877 = vmatpush1.msra.mxu0 %v374
        %878 = vmatprep.subr.mxu0 0.0
        %879 = vmatpush1.msra.mxu0 %v375
        %880 = vmatprep.subr.mxu0 0.0
        %881 = vmatpush1.msra.mxu0 %v376
        %882 = vmatprep.subr.mxu0 0.0
        %883 = vmatpush1.msra.mxu0 %v377
        %884 = vmatprep.subr.mxu0 0.0
        %885 = vmatpush1.msra.mxu0 %v378
        %886 = vmatprep.subr.mxu0 0.0
        %887 = vmatpush1.msra.mxu0 %v379
        %888 = vmatprep.subr.mxu0 0.0
        %889 = vmatpush1.msra.mxu0 %v380
        %890 = vmatprep.subr.mxu0 0.0
        %891 = vmatpush1.msra.mxu0 %v381
        %892 = vmatprep.subr.mxu0 0.0
        %893 = vmatpush1.msra.mxu0 %v382
        %894 = vmatprep.subr.mxu0 0.0
        %895 = vmatpush1.msra.mxu0 %v383
        %896 = vmatprep.mubr.f32.mxu0 %v401
        %897 = vmatmul.mubr.f32.gmra.mrb[0].mxu0 %v400
        %v898 = vpop.f32.mrb[0].mxu0
        %v899 = vadd.f32 0.0, %v898
        %v900 = vpop.f32.mrb[0].mxu0
        %901 = vmatprep.mubr.f32.mxu0 %v404
        %902 = vmatmul.mubr.f32.gmra.mrb[0].mxu0 %v403
        %v903 = vpop.f32.mrb[0].mxu0
        %v904 = vadd.f32 0.0, %v903
        %v905 = vpop.f32.mrb[0].mxu0
        %906 = vmatprep.mubr.f32.mxu0 %v407
        %907 = vmatmul.mubr.f32.gmra.mrb[0].mxu0 %v406
        %v908 = vpop.f32.mrb[0].mxu0
        %v909 = vadd.f32 0.0, %v908
        %v910 = vpop.f32.mrb[0].mxu0
        %911 = vmatprep.mubr.f32.mxu0 %v410
        %912 = vmatmul.mubr.f32.gmra.mrb[0].mxu0 %v409
        %v913 = vpop.f32.mrb[0].mxu0
        %v914 = vadd.f32 0.0, %v913
        %v915 = vpop.f32.mrb[0].mxu0
        %916 = vmatprep.mubr.f32.mxu0 %v413
        %917 = vmatmul.mubr.f32.gmra.mrb[0].mxu0 %v412
        %v918 = vpop.f32.mrb[0].mxu0
        %v919 = vadd.f32 0.0, %v918
        %v920 = vpop.f32.mrb[0].mxu0
        %921 = vmatprep.mubr.f32.mxu0 %v416
        %922 = vmatmul.mubr.f32.gmra.mrb[0].mxu0 %v415
        %v923 = vpop.f32.mrb[0].mxu0
        %v924 = vadd.f32 0.0, %v923
        %v925 = vpop.f32.mrb[0].mxu0
        %926 = vmatprep.mubr.f32.mxu0 %v419
        %927 = vmatmul.mubr.f32.gmra.mrb[0].mxu0 %v418
        %v928 = vpop.f32.mrb[0].mxu0
        %v929 = vadd.f32 0.0, %v928
        %v930 = vpop.f32.mrb[0].mxu0
        %931 = vmatprep.mubr.f32.mxu0 %v422
        %932 = vmatmul.mubr.f32.gmra.mrb[0].mxu0 %v421
        %v933 = vpop.f32.mrb[0].mxu0
        %v934 = vadd.f32 0.0, %v933
        %v935 = vpop.f32.mrb[0].mxu0
        %936 = vmatprep.mubr.f32.mxu0 %v425
        %937 = vmatmul.mubr.f32.gmra.mrb[0].mxu0 %v424
        %v938 = vpop.f32.mrb[0].mxu0
        %v939 = vadd.f32 0.0, %v938
        %v940 = vpop.f32.mrb[0].mxu0
        %941 = vmatprep.mubr.f32.mxu0 %v428
        %942 = vmatmul.mubr.f32.gmra.mrb[0].mxu0 %v427
        %v943 = vpop.f32.mrb[0].mxu0
        %v944 = vadd.f32 0.0, %v943
        %v945 = vpop.f32.mrb[0].mxu0
        %946 = vmatprep.mubr.f32.mxu0 %v431
        %947 = vmatmul.mubr.f32.gmra.mrb[0].mxu0 %v430
        %v948 = vpop.f32.mrb[0].mxu0
        %v949 = vadd.f32 0.0, %v948
        %v950 = vpop.f32.mrb[0].mxu0
        %951 = vmatprep.mubr.f32.mxu0 %v434
        %952 = vmatmul.mubr.f32.gmra.mrb[0].mxu0 %v433
        %v953 = vpop.f32.mrb[0].mxu0
        %v954 = vadd.f32 0.0, %v953
        %v955 = vpop.f32.mrb[0].mxu0
        %956 = vmatprep.mubr.f32.mxu0 %v437
        %957 = vmatmul.mubr.f32.gmra.mrb[0].mxu0 %v436
        %v958 = vpop.f32.mrb[0].mxu0
        %v959 = vadd.f32 0.0, %v958
        %v960 = vpop.f32.mrb[0].mxu0
        %961 = vmatprep.mubr.f32.mxu0 %v440
        %962 = vmatmul.mubr.f32.gmra.mrb[0].mxu0 %v439
        %v963 = vpop.f32.mrb[0].mxu0
        %v964 = vadd.f32 0.0, %v963
        %v965 = vpop.f32.mrb[0].mxu0
        %966 = vmatprep.mubr.f32.mxu0 %v443
        %967 = vmatmul.mubr.f32.gmra.mrb[0].mxu0 %v442
        %v968 = vpop.f32.mrb[0].mxu0
        %v969 = vadd.f32 0.0, %v968
        %v970 = vpop.f32.mrb[0].mxu0
        %971 = vmatprep.mubr.f32.mxu0 %v446
        %972 = vmatmul.mubr.f32.gmra.mrb[0].mxu0 %v445
        %v973 = vpop.f32.mrb[0].mxu0
        %v974 = vadd.f32 0.0, %v973
        %v975 = vpop.f32.mrb[0].mxu0
        %976 = vmatprep.mubr.f32.mxu0 %v449
        %977 = vmatmul.mubr.f32.gmra.mrb[0].mxu0 %v448
        %v978 = vpop.f32.mrb[0].mxu0
        %v979 = vadd.f32 0.0, %v978
        %v980 = vpop.f32.mrb[0].mxu0
        %981 = vmatprep.mubr.f32.mxu0 %v452
        %982 = vmatmul.mubr.f32.gmra.mrb[0].mxu0 %v451
        %v983 = vpop.f32.mrb[0].mxu0
        %v984 = vadd.f32 0.0, %v983
        %v985 = vpop.f32.mrb[0].mxu0
        %986 = vmatprep.mubr.f32.mxu0 %v455
        %987 = vmatmul.mubr.f32.gmra.mrb[0].mxu0 %v454
        %v988 = vpop.f32.mrb[0].mxu0
        %v989 = vadd.f32 0.0, %v988
        %v990 = vpop.f32.mrb[0].mxu0
        %991 = vmatprep.mubr.f32.mxu0 %v458
        %992 = vmatmul.mubr.f32.gmra.mrb[0].mxu0 %v457
        %v993 = vpop.f32.mrb[0].mxu0
        %v994 = vadd.f32 0.0, %v993
        %v995 = vpop.f32.mrb[0].mxu0
        %996 = vmatprep.mubr.f32.mxu0 %v461
        %997 = vmatmul.mubr.f32.gmra.mrb[0].mxu0 %v460
        %v998 = vpop.f32.mrb[0].mxu0
        %v999 = vadd.f32 0.0, %v998
        %v1000 = vpop.f32.mrb[0].mxu0
        %1001 = vmatprep.mubr.f32.mxu0 %v464
        %1002 = vmatmul.mubr.f32.gmra.mrb[0].mxu0 %v463
        %v1003 = vpop.f32.mrb[0].mxu0
        %v1004 = vadd.f32 0.0, %v1003
        %v1005 = vpop.f32.mrb[0].mxu0
        %1006 = vmatprep.mubr.f32.mxu0 %v467
        %1007 = vmatmul.mubr.f32.gmra.mrb[0].mxu0 %v466
        %v1008 = vpop.f32.mrb[0].mxu0
        %v1009 = vadd.f32 0.0, %v1008
        %v1010 = vpop.f32.mrb[0].mxu0
        %1011 = vmatprep.mubr.f32.mxu0 %v470
        %1012 = vmatmul.mubr.f32.gmra.mrb[0].mxu0 %v469
        %v1013 = vpop.f32.mrb[0].mxu0
        %v1014 = vadd.f32 0.0, %v1013
        %v1015 = vpop.f32.mrb[0].mxu0
        %1016 = vmatprep.mubr.f32.mxu0 %v473
        %1017 = vmatmul.mubr.f32.gmra.mrb[0].mxu0 %v472
        %v1018 = vpop.f32.mrb[0].mxu0
        %v1019 = vadd.f32 0.0, %v1018
        %v1020 = vpop.f32.mrb[0].mxu0
        %1021 = vmatprep.mubr.f32.mxu0 %v476
        %1022 = vmatmul.mubr.f32.gmra.mrb[0].mxu0 %v475
        %v1023 = vpop.f32.mrb[0].mxu0
        %v1024 = vadd.f32 0.0, %v1023
        %v1025 = vpop.f32.mrb[0].mxu0
        %1026 = vmatprep.mubr.f32.mxu0 %v479
        %1027 = vmatmul.mubr.f32.gmra.mrb[0].mxu0 %v478
        %v1028 = vpop.f32.mrb[0].mxu0
        %v1029 = vadd.f32 0.0, %v1028
        %v1030 = vpop.f32.mrb[0].mxu0
        %1031 = vmatprep.mubr.f32.mxu0 %v482
        %1032 = vmatmul.mubr.f32.gmra.mrb[0].mxu0 %v481
        %v1033 = vpop.f32.mrb[0].mxu0
        %v1034 = vadd.f32 0.0, %v1033
        %v1035 = vpop.f32.mrb[0].mxu0
        %1036 = vmatprep.mubr.f32.mxu0 %v485
        %1037 = vmatmul.mubr.f32.gmra.mrb[0].mxu0 %v484
        %v1038 = vpop.f32.mrb[0].mxu0
        %v1039 = vadd.f32 0.0, %v1038
        %v1040 = vpop.f32.mrb[0].mxu0
        %1041 = vmatprep.mubr.f32.mxu0 %v488
        %1042 = vmatmul.mubr.f32.gmra.mrb[0].mxu0 %v487
        %v1043 = vpop.f32.mrb[0].mxu0
        %v1044 = vadd.f32 0.0, %v1043
        %v1045 = vpop.f32.mrb[0].mxu0
        %1046 = vmatprep.mubr.f32.mxu0 %v491
        %1047 = vmatmul.mubr.f32.gmra.mrb[0].mxu0 %v490
        %v1048 = vpop.f32.mrb[0].mxu0
        %v1049 = vadd.f32 0.0, %v1048
        %v1050 = vpop.f32.mrb[0].mxu0
        %1051 = vmatprep.mubr.f32.mxu0 %v494
        %1052 = vmatmul.mubr.f32.gmra.mrb[0].mxu0 %v493
        %v1053 = vpop.f32.mrb[0].mxu0
        %v1054 = vadd.f32 0.0, %v1053
        %v1055 = vpop.f32.mrb[0].mxu0
        %1056 = vmatprep.mubr.f32.mxu0 %v497
        %1057 = vmatmul.mubr.f32.gmra.mrb[0].mxu0 %v496
        %v1058 = vpop.f32.mrb[0].mxu0
        %v1059 = vadd.f32 0.0, %v1058
        %v1060 = vpop.f32.mrb[0].mxu0
        %1061 = vmatprep.mubr.f32.mxu0 %v500
        %1062 = vmatmul.mubr.f32.gmra.mrb[0].mxu0 %v499
        %v1063 = vpop.f32.mrb[0].mxu0
        %v1064 = vadd.f32 0.0, %v1063
        %v1065 = vpop.f32.mrb[0].mxu0
        %1066 = vmatprep.mubr.f32.mxu0 %v503
        %1067 = vmatmul.mubr.f32.gmra.mrb[0].mxu0 %v502
        %v1068 = vpop.f32.mrb[0].mxu0
        %v1069 = vadd.f32 0.0, %v1068
        %v1070 = vpop.f32.mrb[0].mxu0
        %1071 = vmatprep.mubr.f32.mxu0 %v506
        %1072 = vmatmul.mubr.f32.gmra.mrb[0].mxu0 %v505
        %v1073 = vpop.f32.mrb[0].mxu0
        %v1074 = vadd.f32 0.0, %v1073
        %v1075 = vpop.f32.mrb[0].mxu0
        %1076 = vmatprep.mubr.f32.mxu0 %v509
        %1077 = vmatmul.mubr.f32.gmra.mrb[0].mxu0 %v508
        %v1078 = vpop.f32.mrb[0].mxu0
        %v1079 = vadd.f32 0.0, %v1078
        %v1080 = vpop.f32.mrb[0].mxu0
        %1081 = vmatprep.mubr.f32.mxu0 %v512
        %1082 = vmatmul.mubr.f32.gmra.mrb[0].mxu0 %v511
        %v1083 = vpop.f32.mrb[0].mxu0
        %v1084 = vadd.f32 0.0, %v1083
        %v1085 = vpop.f32.mrb[0].mxu0
        %1086 = vmatprep.mubr.f32.mxu0 %v515
        %1087 = vmatmul.mubr.f32.gmra.mrb[0].mxu0 %v514
        %v1088 = vpop.f32.mrb[0].mxu0
        %v1089 = vadd.f32 0.0, %v1088
        %v1090 = vpop.f32.mrb[0].mxu0
        %1091 = vmatprep.mubr.f32.mxu0 %v518
        %1092 = vmatmul.mubr.f32.gmra.mrb[0].mxu0 %v517
        %v1093 = vpop.f32.mrb[0].mxu0
        %v1094 = vadd.f32 0.0, %v1093
        %v1095 = vpop.f32.mrb[0].mxu0
        %1096 = vmatprep.mubr.f32.mxu0 %v521
        %1097 = vmatmul.mubr.f32.gmra.mrb[0].mxu0 %v520
        %v1098 = vpop.f32.mrb[0].mxu0
        %v1099 = vadd.f32 0.0, %v1098
        %v1100 = vpop.f32.mrb[0].mxu0
        %1101 = vmatprep.mubr.f32.mxu0 %v524
        %1102 = vmatmul.mubr.f32.gmra.mrb[0].mxu0 %v523
        %v1103 = vpop.f32.mrb[0].mxu0
        %v1104 = vadd.f32 0.0, %v1103
        %v1105 = vpop.f32.mrb[0].mxu0
        %1106 = vmatprep.mubr.f32.mxu0 %v527
        %1107 = vmatmul.mubr.f32.gmra.mrb[0].mxu0 %v526
        %v1108 = vpop.f32.mrb[0].mxu0
        %v1109 = vadd.f32 0.0, %v1108
        %v1110 = vpop.f32.mrb[0].mxu0
        %1111 = vmatprep.mubr.f32.mxu0 %v530
        %1112 = vmatmul.mubr.f32.gmra.mrb[0].mxu0 %v529
        %v1113 = vpop.f32.mrb[0].mxu0
        %v1114 = vadd.f32 0.0, %v1113
        %v1115 = vpop.f32.mrb[0].mxu0
        %1116 = vmatprep.mubr.f32.mxu0 %v533
        %1117 = vmatmul.mubr.f32.gmra.mrb[0].mxu0 %v532
        %v1118 = vpop.f32.mrb[0].mxu0
        %v1119 = vadd.f32 0.0, %v1118
        %v1120 = vpop.f32.mrb[0].mxu0
        %1121 = vmatprep.mubr.f32.mxu0 %v536
        %1122 = vmatmul.mubr.f32.gmra.mrb[0].mxu0 %v535
        %v1123 = vpop.f32.mrb[0].mxu0
        %v1124 = vadd.f32 0.0, %v1123
        %v1125 = vpop.f32.mrb[0].mxu0
        %1126 = vmatprep.mubr.f32.mxu0 %v539
        %1127 = vmatmul.mubr.f32.gmra.mrb[0].mxu0 %v538
        %v1128 = vpop.f32.mrb[0].mxu0
        %v1129 = vadd.f32 0.0, %v1128
        %v1130 = vpop.f32.mrb[0].mxu0
        %1131 = vmatprep.mubr.f32.mxu0 %v542
        %1132 = vmatmul.mubr.f32.gmra.mrb[0].mxu0 %v541
        %v1133 = vpop.f32.mrb[0].mxu0
        %v1134 = vadd.f32 0.0, %v1133
        %v1135 = vpop.f32.mrb[0].mxu0
        %1136 = vmatprep.mubr.f32.mxu0 %v545
        %1137 = vmatmul.mubr.f32.gmra.mrb[0].mxu0 %v544
        %v1138 = vpop.f32.mrb[0].mxu0
        %v1139 = vadd.f32 0.0, %v1138
        %v1140 = vpop.f32.mrb[0].mxu0
        %1141 = vmatprep.mubr.f32.mxu0 %v548
        %1142 = vmatmul.mubr.f32.gmra.mrb[0].mxu0 %v547
        %v1143 = vpop.f32.mrb[0].mxu0
        %v1144 = vadd.f32 0.0, %v1143
        %v1145 = vpop.f32.mrb[0].mxu0
        %1146 = vmatprep.mubr.f32.mxu0 %v551
        %1147 = vmatmul.mubr.f32.gmra.mrb[0].mxu0 %v550
        %v1148 = vpop.f32.mrb[0].mxu0
        %v1149 = vadd.f32 0.0, %v1148
        %v1150 = vpop.f32.mrb[0].mxu0
        %1151 = vmatprep.mubr.f32.mxu0 %v554
        %1152 = vmatmul.mubr.f32.gmra.mrb[0].mxu0 %v553
        %v1153 = vpop.f32.mrb[0].mxu0
        %v1154 = vadd.f32 0.0, %v1153
        %v1155 = vpop.f32.mrb[0].mxu0
        %1156 = vmatprep.mubr.f32.mxu0 %v557
        %1157 = vmatmul.mubr.f32.gmra.mrb[0].mxu0 %v556
        %v1158 = vpop.f32.mrb[0].mxu0
        %v1159 = vadd.f32 0.0, %v1158
        %v1160 = vpop.f32.mrb[0].mxu0
        %1161 = vmatprep.mubr.f32.mxu0 %v560
        %1162 = vmatmul.mubr.f32.gmra.mrb[0].mxu0 %v559
        %v1163 = vpop.f32.mrb[0].mxu0
        %v1164 = vadd.f32 0.0, %v1163
        %v1165 = vpop.f32.mrb[0].mxu0
        %1166 = vmatprep.mubr.f32.mxu0 %v563
        %1167 = vmatmul.mubr.f32.gmra.mrb[0].mxu0 %v562
        %v1168 = vpop.f32.mrb[0].mxu0
        %v1169 = vadd.f32 0.0, %v1168
        %v1170 = vpop.f32.mrb[0].mxu0
        %1171 = vmatprep.mubr.f32.mxu0 %v566
        %1172 = vmatmul.mubr.f32.gmra.mrb[0].mxu0 %v565
        %v1173 = vpop.f32.mrb[0].mxu0
        %v1174 = vadd.f32 0.0, %v1173
        %v1175 = vpop.f32.mrb[0].mxu0
        %1176 = vmatprep.mubr.f32.mxu0 %v569
        %1177 = vmatmul.mubr.f32.gmra.mrb[0].mxu0 %v568
        %v1178 = vpop.f32.mrb[0].mxu0
        %v1179 = vadd.f32 0.0, %v1178
        %v1180 = vpop.f32.mrb[0].mxu0
        %1181 = vmatprep.mubr.f32.mxu0 %v572
        %1182 = vmatmul.mubr.f32.gmra.mrb[0].mxu0 %v571
        %v1183 = vpop.f32.mrb[0].mxu0
        %v1184 = vadd.f32 0.0, %v1183
        %v1185 = vpop.f32.mrb[0].mxu0
        %1186 = vmatprep.mubr.f32.mxu0 %v575
        %1187 = vmatmul.mubr.f32.gmra.mrb[0].mxu0 %v574
        %v1188 = vpop.f32.mrb[0].mxu0
        %v1189 = vadd.f32 0.0, %v1188
        %v1190 = vpop.f32.mrb[0].mxu0
        %1191 = vmatprep.mubr.f32.mxu0 %v578
        %1192 = vmatmul.mubr.f32.gmra.mrb[0].mxu0 %v577
        %v1193 = vpop.f32.mrb[0].mxu0
        %v1194 = vadd.f32 0.0, %v1193
        %v1195 = vpop.f32.mrb[0].mxu0
        %1196 = vmatprep.mubr.f32.mxu0 %v581
        %1197 = vmatmul.mubr.f32.gmra.mrb[0].mxu0 %v580
        %v1198 = vpop.f32.mrb[0].mxu0
        %v1199 = vadd.f32 0.0, %v1198
        %v1200 = vpop.f32.mrb[0].mxu0
        %1201 = vmatprep.mubr.f32.mxu0 %v584
        %1202 = vmatmul.mubr.f32.gmra.mrb[0].mxu0 %v583
        %v1203 = vpop.f32.mrb[0].mxu0
        %v1204 = vadd.f32 0.0, %v1203
        %v1205 = vpop.f32.mrb[0].mxu0
        %1206 = vmatprep.mubr.f32.mxu0 %v587
        %1207 = vmatmul.mubr.f32.gmra.mrb[0].mxu0 %v586
        %v1208 = vpop.f32.mrb[0].mxu0
        %v1209 = vadd.f32 0.0, %v1208
        %v1210 = vpop.f32.mrb[0].mxu0
        %1211 = vmatprep.mubr.f32.mxu0 %v590
        %1212 = vmatmul.mubr.f32.gmra.mrb[0].mxu0 %v589
        %v1213 = vpop.f32.mrb[0].mxu0
        %v1214 = vadd.f32 0.0, %v1213
        %v1215 = vpop.f32.mrb[0].mxu0
        %1216 = vmatprep.mubr.f32.mxu0 %v593
        %1217 = vmatmul.mubr.f32.gmra.mrb[0].mxu0 %v592
        %v1218 = vpop.f32.mrb[0].mxu0
        %v1219 = vadd.f32 0.0, %v1218
        %v1220 = vpop.f32.mrb[0].mxu0
        %1221 = vmatprep.mubr.f32.mxu0 %v596
        %1222 = vmatmul.mubr.f32.gmra.mrb[0].mxu0 %v595
        %v1223 = vpop.f32.mrb[0].mxu0
        %v1224 = vadd.f32 0.0, %v1223
        %v1225 = vpop.f32.mrb[0].mxu0
        %1226 = vmatprep.mubr.f32.mxu0 %v599
        %1227 = vmatmul.mubr.f32.gmra.mrb[0].mxu0 %v598
        %v1228 = vpop.f32.mrb[0].mxu0
        %v1229 = vadd.f32 0.0, %v1228
        %v1230 = vpop.f32.mrb[0].mxu0
        %1231 = vmatprep.mubr.f32.mxu0 %v602
        %1232 = vmatmul.mubr.f32.gmra.mrb[0].mxu0 %v601
        %v1233 = vpop.f32.mrb[0].mxu0
        %v1234 = vadd.f32 0.0, %v1233
        %v1235 = vpop.f32.mrb[0].mxu0
        %1236 = vmatprep.mubr.f32.mxu0 %v605
        %1237 = vmatmul.mubr.f32.gmra.mrb[0].mxu0 %v604
        %v1238 = vpop.f32.mrb[0].mxu0
        %v1239 = vadd.f32 0.0, %v1238
        %v1240 = vpop.f32.mrb[0].mxu0
        %1241 = vmatprep.mubr.f32.mxu0 %v608
        %1242 = vmatmul.mubr.f32.gmra.mrb[0].mxu0 %v607
        %v1243 = vpop.f32.mrb[0].mxu0
        %v1244 = vadd.f32 0.0, %v1243
        %v1245 = vpop.f32.mrb[0].mxu0
        %1246 = vmatprep.mubr.f32.mxu0 %v611
        %1247 = vmatmul.mubr.f32.gmra.mrb[0].mxu0 %v610
        %v1248 = vpop.f32.mrb[0].mxu0
        %v1249 = vadd.f32 0.0, %v1248
        %v1250 = vpop.f32.mrb[0].mxu0
        %1251 = vmatprep.mubr.f32.mxu0 %v614
        %1252 = vmatmul.mubr.f32.gmra.mrb[0].mxu0 %v613
        %v1253 = vpop.f32.mrb[0].mxu0
        %v1254 = vadd.f32 0.0, %v1253
        %v1255 = vpop.f32.mrb[0].mxu0
        %1256 = vmatprep.mubr.f32.mxu0 %v617
        %1257 = vmatmul.mubr.f32.gmra.mrb[0].mxu0 %v616
        %v1258 = vpop.f32.mrb[0].mxu0
        %v1259 = vadd.f32 0.0, %v1258
        %v1260 = vpop.f32.mrb[0].mxu0
        %1261 = vmatprep.mubr.f32.mxu0 %v620
        %1262 = vmatmul.mubr.f32.gmra.mrb[0].mxu0 %v619
        %v1263 = vpop.f32.mrb[0].mxu0
        %v1264 = vadd.f32 0.0, %v1263
        %v1265 = vpop.f32.mrb[0].mxu0
        %1266 = vmatprep.mubr.f32.mxu0 %v623
        %1267 = vmatmul.mubr.f32.gmra.mrb[0].mxu0 %v622
        %v1268 = vpop.f32.mrb[0].mxu0
        %v1269 = vadd.f32 0.0, %v1268
        %v1270 = vpop.f32.mrb[0].mxu0
        %1271 = vmatprep.mubr.f32.mxu0 %v626
        %1272 = vmatmul.mubr.f32.gmra.mrb[0].mxu0 %v625
        %v1273 = vpop.f32.mrb[0].mxu0
        %v1274 = vadd.f32 0.0, %v1273
        %v1275 = vpop.f32.mrb[0].mxu0
        %1276 = vmatprep.mubr.f32.mxu0 %v629
        %1277 = vmatmul.mubr.f32.gmra.mrb[0].mxu0 %v628
        %v1278 = vpop.f32.mrb[0].mxu0
        %v1279 = vadd.f32 0.0, %v1278
        %v1280 = vpop.f32.mrb[0].mxu0
        %1281 = vmatprep.mubr.f32.mxu0 %v632
        %1282 = vmatmul.mubr.f32.gmra.mrb[0].mxu0 %v631
        %v1283 = vpop.f32.mrb[0].mxu0
        %v1284 = vadd.f32 0.0, %v1283
        %v1285 = vpop.f32.mrb[0].mxu0
        %1286 = vmatprep.mubr.f32.mxu0 %v635
        %1287 = vmatmul.mubr.f32.gmra.mrb[0].mxu0 %v634
        %v1288 = vpop.f32.mrb[0].mxu0
        %v1289 = vadd.f32 0.0, %v1288
        %v1290 = vpop.f32.mrb[0].mxu0
        %1291 = vmatprep.mubr.f32.mxu0 %v638
        %1292 = vmatmul.mubr.f32.gmra.mrb[0].mxu0 %v637
        %v1293 = vpop.f32.mrb[0].mxu0
        %v1294 = vadd.f32 0.0, %v1293
        %v1295 = vpop.f32.mrb[0].mxu0
        %1296 = vmatprep.mubr.f32.mxu0 %v641
        %1297 = vmatmul.mubr.f32.gmra.mrb[0].mxu0 %v640
        %v1298 = vpop.f32.mrb[0].mxu0
        %v1299 = vadd.f32 0.0, %v1298
        %v1300 = vpop.f32.mrb[0].mxu0
        %1301 = vmatprep.mubr.f32.mxu0 %v644
        %1302 = vmatmul.mubr.f32.gmra.mrb[0].mxu0 %v643
        %v1303 = vpop.f32.mrb[0].mxu0
        %v1304 = vadd.f32 0.0, %v1303
        %v1305 = vpop.f32.mrb[0].mxu0
        %1306 = vmatprep.mubr.f32.mxu0 %v647
        %1307 = vmatmul.mubr.f32.gmra.mrb[0].mxu0 %v646
        %v1308 = vpop.f32.mrb[0].mxu0
        %v1309 = vadd.f32 0.0, %v1308
        %v1310 = vpop.f32.mrb[0].mxu0
        %1311 = vmatprep.mubr.f32.mxu0 %v650
        %1312 = vmatmul.mubr.f32.gmra.mrb[0].mxu0 %v649
        %v1313 = vpop.f32.mrb[0].mxu0
        %v1314 = vadd.f32 0.0, %v1313
        %v1315 = vpop.f32.mrb[0].mxu0
        %1316 = vmatprep.mubr.f32.mxu0 %v653
        %1317 = vmatmul.mubr.f32.gmra.mrb[0].mxu0 %v652
        %v1318 = vpop.f32.mrb[0].mxu0
        %v1319 = vadd.f32 0.0, %v1318
        %v1320 = vpop.f32.mrb[0].mxu0
        %1321 = vmatprep.mubr.f32.mxu0 %v656
        %1322 = vmatmul.mubr.f32.gmra.mrb[0].mxu0 %v655
        %v1323 = vpop.f32.mrb[0].mxu0
        %v1324 = vadd.f32 0.0, %v1323
        %v1325 = vpop.f32.mrb[0].mxu0
        %1326 = vmatprep.mubr.f32.mxu0 %v659
        %1327 = vmatmul.mubr.f32.gmra.mrb[0].mxu0 %v658
        %v1328 = vpop.f32.mrb[0].mxu0
        %v1329 = vadd.f32 0.0, %v1328
        %v1330 = vpop.f32.mrb[0].mxu0
        %1331 = vmatprep.mubr.f32.mxu0 %v662
        %1332 = vmatmul.mubr.f32.gmra.mrb[0].mxu0 %v661
        %v1333 = vpop.f32.mrb[0].mxu0
        %v1334 = vadd.f32 0.0, %v1333
        %v1335 = vpop.f32.mrb[0].mxu0
        %1336 = vmatprep.mubr.f32.mxu0 %v665
        %1337 = vmatmul.mubr.f32.gmra.mrb[0].mxu0 %v664
        %v1338 = vpop.f32.mrb[0].mxu0
        %v1339 = vadd.f32 0.0, %v1338
        %v1340 = vpop.f32.mrb[0].mxu0
        %1341 = vmatprep.mubr.f32.mxu0 %v668
        %1342 = vmatmul.mubr.f32.gmra.mrb[0].mxu0 %v667
        %v1343 = vpop.f32.mrb[0].mxu0
        %v1344 = vadd.f32 0.0, %v1343
        %v1345 = vpop.f32.mrb[0].mxu0
        %1346 = vmatprep.mubr.f32.mxu0 %v671
        %1347 = vmatmul.mubr.f32.gmra.mrb[0].mxu0 %v670
        %v1348 = vpop.f32.mrb[0].mxu0
        %v1349 = vadd.f32 0.0, %v1348
        %v1350 = vpop.f32.mrb[0].mxu0
        %1351 = vmatprep.mubr.f32.mxu0 %v674
        %1352 = vmatmul.mubr.f32.gmra.mrb[0].mxu0 %v673
        %v1353 = vpop.f32.mrb[0].mxu0
        %v1354 = vadd.f32 0.0, %v1353
        %v1355 = vpop.f32.mrb[0].mxu0
        %1356 = vmatprep.mubr.f32.mxu0 %v677
        %1357 = vmatmul.mubr.f32.gmra.mrb[0].mxu0 %v676
        %v1358 = vpop.f32.mrb[0].mxu0
        %v1359 = vadd.f32 0.0, %v1358
        %v1360 = vpop.f32.mrb[0].mxu0
        %1361 = vmatprep.mubr.f32.mxu0 %v680
        %1362 = vmatmul.mubr.f32.gmra.mrb[0].mxu0 %v679
        %v1363 = vpop.f32.mrb[0].mxu0
        %v1364 = vadd.f32 0.0, %v1363
        %v1365 = vpop.f32.mrb[0].mxu0
        %1366 = vmatprep.mubr.f32.mxu0 %v683
        %1367 = vmatmul.mubr.f32.gmra.mrb[0].mxu0 %v682
        %v1368 = vpop.f32.mrb[0].mxu0
        %v1369 = vadd.f32 0.0, %v1368
        %v1370 = vpop.f32.mrb[0].mxu0
        %1371 = vmatprep.mubr.f32.mxu0 %v686
        %1372 = vmatmul.mubr.f32.gmra.mrb[0].mxu0 %v685
        %v1373 = vpop.f32.mrb[0].mxu0
        %v1374 = vadd.f32 0.0, %v1373
        %v1375 = vpop.f32.mrb[0].mxu0
        %1376 = vmatprep.mubr.f32.mxu0 %v689
        %1377 = vmatmul.mubr.f32.gmra.mrb[0].mxu0 %v688
        %v1378 = vpop.f32.mrb[0].mxu0
        %v1379 = vadd.f32 0.0, %v1378
        %v1380 = vpop.f32.mrb[0].mxu0
        %1381 = vmatprep.mubr.f32.mxu0 %v692
        %1382 = vmatmul.mubr.f32.gmra.mrb[0].mxu0 %v691
        %v1383 = vpop.f32.mrb[0].mxu0
        %v1384 = vadd.f32 0.0, %v1383
        %v1385 = vpop.f32.mrb[0].mxu0
        %1386 = vmatprep.mubr.f32.mxu0 %v695
        %1387 = vmatmul.mubr.f32.gmra.mrb[0].mxu0 %v694
        %v1388 = vpop.f32.mrb[0].mxu0
        %v1389 = vadd.f32 0.0, %v1388
        %v1390 = vpop.f32.mrb[0].mxu0
        %1391 = vmatprep.mubr.f32.mxu0 %v698
        %1392 = vmatmul.mubr.f32.gmra.mrb[0].mxu0 %v697
        %v1393 = vpop.f32.mrb[0].mxu0
        %v1394 = vadd.f32 0.0, %v1393
        %v1395 = vpop.f32.mrb[0].mxu0
        %1396 = vmatprep.mubr.f32.mxu0 %v701
        %1397 = vmatmul.mubr.f32.gmra.mrb[0].mxu0 %v700
        %v1398 = vpop.f32.mrb[0].mxu0
        %v1399 = vadd.f32 0.0, %v1398
        %v1400 = vpop.f32.mrb[0].mxu0
        %1401 = vmatprep.mubr.f32.mxu0 %v704
        %1402 = vmatmul.mubr.f32.gmra.mrb[0].mxu0 %v703
        %v1403 = vpop.f32.mrb[0].mxu0
        %v1404 = vadd.f32 0.0, %v1403
        %v1405 = vpop.f32.mrb[0].mxu0
        %1406 = vmatprep.mubr.f32.mxu0 %v707
        %1407 = vmatmul.mubr.f32.gmra.mrb[0].mxu0 %v706
        %v1408 = vpop.f32.mrb[0].mxu0
        %v1409 = vadd.f32 0.0, %v1408
        %v1410 = vpop.f32.mrb[0].mxu0
        %1411 = vmatprep.mubr.f32.mxu0 %v710
        %1412 = vmatmul.mubr.f32.gmra.mrb[0].mxu0 %v709
        %v1413 = vpop.f32.mrb[0].mxu0
        %v1414 = vadd.f32 0.0, %v1413
        %v1415 = vpop.f32.mrb[0].mxu0
        %1416 = vmatprep.mubr.f32.mxu0 %v713
        %1417 = vmatmul.mubr.f32.gmra.mrb[0].mxu0 %v712
        %v1418 = vpop.f32.mrb[0].mxu0
        %v1419 = vadd.f32 0.0, %v1418
        %v1420 = vpop.f32.mrb[0].mxu0
        %1421 = vmatprep.mubr.f32.mxu0 %v716
        %1422 = vmatmul.mubr.f32.gmra.mrb[0].mxu0 %v715
        %v1423 = vpop.f32.mrb[0].mxu0
        %v1424 = vadd.f32 0.0, %v1423
        %v1425 = vpop.f32.mrb[0].mxu0
        %1426 = vmatprep.mubr.f32.mxu0 %v719
        %1427 = vmatmul.mubr.f32.gmra.mrb[0].mxu0 %v718
        %v1428 = vpop.f32.mrb[0].mxu0
        %v1429 = vadd.f32 0.0, %v1428
        %v1430 = vpop.f32.mrb[0].mxu0
        %1431 = vmatprep.mubr.f32.mxu0 %v722
        %1432 = vmatmul.mubr.f32.gmra.mrb[0].mxu0 %v721
        %v1433 = vpop.f32.mrb[0].mxu0
        %v1434 = vadd.f32 0.0, %v1433
        %v1435 = vpop.f32.mrb[0].mxu0
        %1436 = vmatprep.mubr.f32.mxu0 %v725
        %1437 = vmatmul.mubr.f32.gmra.mrb[0].mxu0 %v724
        %v1438 = vpop.f32.mrb[0].mxu0
        %v1439 = vadd.f32 0.0, %v1438
        %v1440 = vpop.f32.mrb[0].mxu0
        %1441 = vmatprep.mubr.f32.mxu0 %v728
        %1442 = vmatmul.mubr.f32.gmra.mrb[0].mxu0 %v727
        %v1443 = vpop.f32.mrb[0].mxu0
        %v1444 = vadd.f32 0.0, %v1443
        %v1445 = vpop.f32.mrb[0].mxu0
        %1446 = vmatprep.mubr.f32.mxu0 %v731
        %1447 = vmatmul.mubr.f32.gmra.mrb[0].mxu0 %v730
        %v1448 = vpop.f32.mrb[0].mxu0
        %v1449 = vadd.f32 0.0, %v1448
        %v1450 = vpop.f32.mrb[0].mxu0
        %1451 = vmatprep.mubr.f32.mxu0 %v734
        %1452 = vmatmul.mubr.f32.gmra.mrb[0].mxu0 %v733
        %v1453 = vpop.f32.mrb[0].mxu0
        %v1454 = vadd.f32 0.0, %v1453
        %v1455 = vpop.f32.mrb[0].mxu0
        %1456 = vmatprep.mubr.f32.mxu0 %v737
        %1457 = vmatmul.mubr.f32.gmra.mrb[0].mxu0 %v736
        %v1458 = vpop.f32.mrb[0].mxu0
        %v1459 = vadd.f32 0.0, %v1458
        %v1460 = vpop.f32.mrb[0].mxu0
        %1461 = vmatprep.mubr.f32.mxu0 %v740
        %1462 = vmatmul.mubr.f32.gmra.mrb[0].mxu0 %v739
        %v1463 = vpop.f32.mrb[0].mxu0
        %v1464 = vadd.f32 0.0, %v1463
        %v1465 = vpop.f32.mrb[0].mxu0
        %1466 = vmatprep.mubr.f32.mxu0 %v743
        %1467 = vmatmul.mubr.f32.gmra.mrb[0].mxu0 %v742
        %v1468 = vpop.f32.mrb[0].mxu0
        %v1469 = vadd.f32 0.0, %v1468
        %v1470 = vpop.f32.mrb[0].mxu0
        %1471 = vmatprep.mubr.f32.mxu0 %v746
        %1472 = vmatmul.mubr.f32.gmra.mrb[0].mxu0 %v745
        %v1473 = vpop.f32.mrb[0].mxu0
        %v1474 = vadd.f32 0.0, %v1473
        %v1475 = vpop.f32.mrb[0].mxu0
        %1476 = vmatprep.mubr.f32.mxu0 %v749
        %1477 = vmatmul.mubr.f32.gmra.mrb[0].mxu0 %v748
        %v1478 = vpop.f32.mrb[0].mxu0
        %v1479 = vadd.f32 0.0, %v1478
        %v1480 = vpop.f32.mrb[0].mxu0
        %1481 = vmatprep.mubr.f32.mxu0 %v752
        %1482 = vmatmul.mubr.f32.gmra.mrb[0].mxu0 %v751
        %v1483 = vpop.f32.mrb[0].mxu0
        %v1484 = vadd.f32 0.0, %v1483
        %v1485 = vpop.f32.mrb[0].mxu0
        %1486 = vmatprep.mubr.f32.mxu0 %v755
        %1487 = vmatmul.mubr.f32.gmra.mrb[0].mxu0 %v754
        %v1488 = vpop.f32.mrb[0].mxu0
        %v1489 = vadd.f32 0.0, %v1488
        %v1490 = vpop.f32.mrb[0].mxu0
        %1491 = vmatprep.mubr.f32.mxu0 %v758
        %1492 = vmatmul.mubr.f32.gmra.mrb[0].mxu0 %v757
        %v1493 = vpop.f32.mrb[0].mxu0
        %v1494 = vadd.f32 0.0, %v1493
        %v1495 = vpop.f32.mrb[0].mxu0
        %1496 = vmatprep.mubr.f32.mxu0 %v761
        %1497 = vmatmul.mubr.f32.gmra.mrb[0].mxu0 %v760
        %v1498 = vpop.f32.mrb[0].mxu0
        %v1499 = vadd.f32 0.0, %v1498
        %v1500 = vpop.f32.mrb[0].mxu0
        %1501 = vmatprep.mubr.f32.mxu0 %v764
        %1502 = vmatmul.mubr.f32.gmra.mrb[0].mxu0 %v763
        %v1503 = vpop.f32.mrb[0].mxu0
        %v1504 = vadd.f32 0.0, %v1503
        %v1505 = vpop.f32.mrb[0].mxu0
        %1506 = vmatprep.mubr.f32.mxu0 %v767
        %1507 = vmatmul.mubr.f32.gmra.mrb[0].mxu0 %v766
        %v1508 = vpop.f32.mrb[0].mxu0
        %v1509 = vadd.f32 0.0, %v1508
        %v1510 = vpop.f32.mrb[0].mxu0
        %1511 = vmatprep.mubr.f32.mxu0 %v770
        %1512 = vmatmul.mubr.f32.gmra.mrb[0].mxu0 %v769
        %v1513 = vpop.f32.mrb[0].mxu0
        %v1514 = vadd.f32 0.0, %v1513
        %v1515 = vpop.f32.mrb[0].mxu0
        %1516 = vmatprep.mubr.f32.mxu0 %v773
        %1517 = vmatmul.mubr.f32.gmra.mrb[0].mxu0 %v772
        %v1518 = vpop.f32.mrb[0].mxu0
        %v1519 = vadd.f32 0.0, %v1518
        %v1520 = vpop.f32.mrb[0].mxu0
        %1521 = vmatprep.mubr.f32.mxu0 %v776
        %1522 = vmatmul.mubr.f32.gmra.mrb[0].mxu0 %v775
        %v1523 = vpop.f32.mrb[0].mxu0
        %v1524 = vadd.f32 0.0, %v1523
        %v1525 = vpop.f32.mrb[0].mxu0
        %1526 = vmatprep.mubr.f32.mxu0 %v779
        %1527 = vmatmul.mubr.f32.gmra.mrb[0].mxu0 %v778
        %v1528 = vpop.f32.mrb[0].mxu0
        %v1529 = vadd.f32 0.0, %v1528
        %v1530 = vpop.f32.mrb[0].mxu0
        %1531 = vmatprep.mubr.f32.mxu0 %v782
        %1532 = vmatmul.mubr.f32.gmra.mrb[0].mxu0 %v781
        %v1533 = vpop.f32.mrb[0].mxu0
        %v1534 = vadd.f32 0.0, %v1533
        %v1535 = vpop.f32.mrb[0].mxu0
        %1536 = vmatprep.mubr.f32.mxu0 %v785
        %1537 = vmatmul.mubr.f32.gmra.mrb[0].mxu0 %v784
        %v1538 = vpop.f32.mrb[0].mxu0
        %v1539 = vadd.f32 0.0, %v1538
        %v1540 = vpop.f32.mrb[0].mxu0
        %1541 = vmatprep.mubr.f32.mxu0 %v788
        %1542 = vmatmul.mubr.f32.gmra.mrb[0].mxu0 %v787
        %v1543 = vpop.f32.mrb[0].mxu0
        %v1544 = vadd.f32 0.0, %v1543
        %v1545 = vpop.f32.mrb[0].mxu0
        %1546 = vmatprep.mubr.f32.mxu0 %v791
        %1547 = vmatmul.mubr.f32.gmra.mrb[0].mxu0 %v790
        %v1548 = vpop.f32.mrb[0].mxu0
        %v1549 = vadd.f32 0.0, %v1548
        %v1550 = vpop.f32.mrb[0].mxu0
        %1551 = vmatprep.mubr.f32.mxu0 %v794
        %1552 = vmatmul.mubr.f32.gmra.mrb[0].mxu0 %v793
        %v1553 = vpop.f32.mrb[0].mxu0
        %v1554 = vadd.f32 0.0, %v1553
        %v1555 = vpop.f32.mrb[0].mxu0
        %1556 = vmatprep.mubr.f32.mxu0 %v797
        %1557 = vmatmul.mubr.f32.gmra.mrb[0].mxu0 %v796
        %v1558 = vpop.f32.mrb[0].mxu0
        %v1559 = vadd.f32 0.0, %v1558
        %v1560 = vpop.f32.mrb[0].mxu0
        %1561 = vmatprep.mubr.f32.mxu0 %v800
        %1562 = vmatmul.mubr.f32.gmra.mrb[0].mxu0 %v799
        %v1563 = vpop.f32.mrb[0].mxu0
        %v1564 = vadd.f32 0.0, %v1563
        %v1565 = vpop.f32.mrb[0].mxu0
        %1566 = vmatprep.mubr.f32.mxu0 %v803
        %1567 = vmatmul.mubr.f32.gmra.mrb[0].mxu0 %v802
        %v1568 = vpop.f32.mrb[0].mxu0
        %v1569 = vadd.f32 0.0, %v1568
        %v1570 = vpop.f32.mrb[0].mxu0
        %1571 = vmatprep.mubr.f32.mxu0 %v806
        %1572 = vmatmul.mubr.f32.gmra.mrb[0].mxu0 %v805
        %v1573 = vpop.f32.mrb[0].mxu0
        %v1574 = vadd.f32 0.0, %v1573
        %v1575 = vpop.f32.mrb[0].mxu0
        %1576 = vmatprep.mubr.f32.mxu0 %v809
        %1577 = vmatmul.mubr.f32.gmra.mrb[0].mxu0 %v808
        %v1578 = vpop.f32.mrb[0].mxu0
        %v1579 = vadd.f32 0.0, %v1578
        %v1580 = vpop.f32.mrb[0].mxu0
        %1581 = vmatprep.mubr.f32.mxu0 %v812
        %1582 = vmatmul.mubr.f32.gmra.mrb[0].mxu0 %v811
        %v1583 = vpop.f32.mrb[0].mxu0
        %v1584 = vadd.f32 0.0, %v1583
        %v1585 = vpop.f32.mrb[0].mxu0
        %1586 = vmatprep.mubr.f32.mxu0 %v815
        %1587 = vmatmul.mubr.f32.gmra.mrb[0].mxu0 %v814
        %v1588 = vpop.f32.mrb[0].mxu0
        %v1589 = vadd.f32 0.0, %v1588
        %v1590 = vpop.f32.mrb[0].mxu0
        %1591 = vmatprep.mubr.f32.mxu0 %v818
        %1592 = vmatmul.mubr.f32.gmra.mrb[0].mxu0 %v817
        %v1593 = vpop.f32.mrb[0].mxu0
        %v1594 = vadd.f32 0.0, %v1593
        %v1595 = vpop.f32.mrb[0].mxu0
        %1596 = vmatprep.mubr.f32.mxu0 %v821
        %1597 = vmatmul.mubr.f32.gmra.mrb[0].mxu0 %v820
        %v1598 = vpop.f32.mrb[0].mxu0
        %v1599 = vadd.f32 0.0, %v1598
        %v1600 = vpop.f32.mrb[0].mxu0
        %1601 = vmatprep.mubr.f32.mxu0 %v824
        %1602 = vmatmul.mubr.f32.gmra.mrb[0].mxu0 %v823
        %v1603 = vpop.f32.mrb[0].mxu0
        %v1604 = vadd.f32 0.0, %v1603
        %v1605 = vpop.f32.mrb[0].mxu0
        %1606 = vmatprep.mubr.f32.mxu0 %v827
        %1607 = vmatmul.mubr.f32.gmra.mrb[0].mxu0 %v826
        %v1608 = vpop.f32.mrb[0].mxu0
        %v1609 = vadd.f32 0.0, %v1608
        %v1610 = vpop.f32.mrb[0].mxu0
        %1611 = vmatprep.mubr.f32.mxu0 %v830
        %1612 = vmatmul.mubr.f32.gmra.mrb[0].mxu0 %v829
        %v1613 = vpop.f32.mrb[0].mxu0
        %v1614 = vadd.f32 0.0, %v1613
        %v1615 = vpop.f32.mrb[0].mxu0
        %1616 = vdwg.mxu0
        %1617 = vmatprep.subr.mxu0 0.0
        %1618 = vmatpush1.msra.mxu0 %v384
        %1619 = vmatprep.subr.mxu0 0.0
        %1620 = vmatpush1.msra.mxu0 %v385
        %1621 = vmatprep.subr.mxu0 0.0
        %1622 = vmatpush1.msra.mxu0 %v386
        %1623 = vmatprep.subr.mxu0 0.0
        %1624 = vmatpush1.msra.mxu0 %v387
        %1625 = vmatprep.subr.mxu0 0.0
        %1626 = vmatpush1.msra.mxu0 %v388
        %1627 = vmatprep.subr.mxu0 0.0
        %1628 = vmatpush1.msra.mxu0 %v389
        %1629 = vmatprep.subr.mxu0 0.0
        %1630 = vmatpush1.msra.mxu0 %v390
        %1631 = vmatprep.subr.mxu0 0.0
        %1632 = vmatpush1.msra.mxu0 %v391
        %1633 = vmatprep.subr.mxu0 0.0
        %1634 = vmatpush1.msra.mxu0 %v392
        %1635 = vmatprep.subr.mxu0 0.0
        %1636 = vmatpush1.msra.mxu0 %v393
        %1637 = vmatprep.subr.mxu0 0.0
        %1638 = vmatpush1.msra.mxu0 %v394
        %1639 = vmatprep.subr.mxu0 0.0
        %1640 = vmatpush1.msra.mxu0 %v395
        %1641 = vmatprep.subr.mxu0 0.0
        %1642 = vmatpush1.msra.mxu0 %v396
        %1643 = vmatprep.subr.mxu0 0.0
        %1644 = vmatpush1.msra.mxu0 %v397
        %1645 = vmatprep.subr.mxu0 0.0
        %1646 = vmatpush1.msra.mxu0 %v398
        %1647 = vmatprep.subr.mxu0 0.0
        %1648 = vmatpush1.msra.mxu0 %v399
        %1649 = vmatprep.subr.mxu0 0.0
        %1650 = vmatpush1.msra.mxu0 0.0
        %1651 = vmatprep.subr.mxu0 0.0
        %1652 = vmatpush1.msra.mxu0 0.0
        %1653 = vmatprep.subr.mxu0 0.0
        %1654 = vmatpush1.msra.mxu0 0.0
        %1655 = vmatprep.subr.mxu0 0.0
        %1656 = vmatpush1.msra.mxu0 0.0
        %1657 = vmatprep.subr.mxu0 0.0
        %1658 = vmatpush1.msra.mxu0 0.0
        %1659 = vmatprep.subr.mxu0 0.0
        %1660 = vmatpush1.msra.mxu0 0.0
        %1661 = vmatprep.subr.mxu0 0.0
        %1662 = vmatpush1.msra.mxu0 0.0
        %1663 = vmatprep.subr.mxu0 0.0
        %1664 = vmatpush1.msra.mxu0 0.0
        %1665 = vmatprep.subr.mxu0 0.0
        %1666 = vmatpush1.msra.mxu0 0.0
        %1667 = vmatprep.subr.mxu0 0.0
        %1668 = vmatpush1.msra.mxu0 0.0
        %1669 = vmatprep.subr.mxu0 0.0
        %1670 = vmatpush1.msra.mxu0 0.0
        %1671 = vmatprep.subr.mxu0 0.0
        %1672 = vmatpush1.msra.mxu0 0.0
        %1673 = vmatprep.subr.mxu0 0.0
        %1674 = vmatpush1.msra.mxu0 0.0
        %1675 = vmatprep.subr.mxu0 0.0
        %1676 = vmatpush1.msra.mxu0 0.0
        %1677 = vmatprep.subr.mxu0 0.0
        %1678 = vmatpush1.msra.mxu0 0.0
        %1679 = vmatprep.subr.mxu0 0.0
        %1680 = vmatpush1.msra.mxu0 0.0
        %1681 = vmatprep.mubr.f32.mxu0 0.0
        %1682 = vmatmul.mubr.f32.gmra.mrb[0].mxu0 %v402
        %v1683 = vpop.f32.mrb[0].mxu0
        %v1684 = vadd.f32 %v899, %v1683
        %v1685 = vpop.f32.mrb[0].mxu0
        %1686 = vmatprep.mubr.f32.mxu0 0.0
        %1687 = vmatmul.mubr.f32.gmra.mrb[0].mxu0 %v405
        %v1688 = vpop.f32.mrb[0].mxu0
        %v1689 = vadd.f32 %v904, %v1688
        %v1690 = vpop.f32.mrb[0].mxu0
        %1691 = vmatprep.mubr.f32.mxu0 0.0
        %1692 = vmatmul.mubr.f32.gmra.mrb[0].mxu0 %v408
        %v1693 = vpop.f32.mrb[0].mxu0
        %v1694 = vadd.f32 %v909, %v1693
        %v1695 = vpop.f32.mrb[0].mxu0
        %1696 = vmatprep.mubr.f32.mxu0 0.0
        %1697 = vmatmul.mubr.f32.gmra.mrb[0].mxu0 %v411
        %v1698 = vpop.f32.mrb[0].mxu0
        %v1699 = vadd.f32 %v914, %v1698
        %v1700 = vpop.f32.mrb[0].mxu0
        %1701 = vmatprep.mubr.f32.mxu0 0.0
        %1702 = vmatmul.mubr.f32.gmra.mrb[0].mxu0 %v414
        %v1703 = vpop.f32.mrb[0].mxu0
        %v1704 = vadd.f32 %v919, %v1703
        %v1705 = vpop.f32.mrb[0].mxu0
        %1706 = vmatprep.mubr.f32.mxu0 0.0
        %1707 = vmatmul.mubr.f32.gmra.mrb[0].mxu0 %v417
        %v1708 = vpop.f32.mrb[0].mxu0
        %v1709 = vadd.f32 %v924, %v1708
        %v1710 = vpop.f32.mrb[0].mxu0
        %1711 = vmatprep.mubr.f32.mxu0 0.0
        %1712 = vmatmul.mubr.f32.gmra.mrb[0].mxu0 %v420
        %v1713 = vpop.f32.mrb[0].mxu0
        %v1714 = vadd.f32 %v929, %v1713
        %v1715 = vpop.f32.mrb[0].mxu0
        %1716 = vmatprep.mubr.f32.mxu0 0.0
        %1717 = vmatmul.mubr.f32.gmra.mrb[0].mxu0 %v423
        %v1718 = vpop.f32.mrb[0].mxu0
        %v1719 = vadd.f32 %v934, %v1718
        %v1720 = vpop.f32.mrb[0].mxu0
        %1721 = vmatprep.mubr.f32.mxu0 0.0
        %1722 = vmatmul.mubr.f32.gmra.mrb[0].mxu0 %v426
        %v1723 = vpop.f32.mrb[0].mxu0
        %v1724 = vadd.f32 %v939, %v1723
        %v1725 = vpop.f32.mrb[0].mxu0
        %1726 = vmatprep.mubr.f32.mxu0 0.0
        %1727 = vmatmul.mubr.f32.gmra.mrb[0].mxu0 %v429
        %v1728 = vpop.f32.mrb[0].mxu0
        %v1729 = vadd.f32 %v944, %v1728
        %v1730 = vpop.f32.mrb[0].mxu0
        %1731 = vmatprep.mubr.f32.mxu0 0.0
        %1732 = vmatmul.mubr.f32.gmra.mrb[0].mxu0 %v432
        %v1733 = vpop.f32.mrb[0].mxu0
        %v1734 = vadd.f32 %v949, %v1733
        %v1735 = vpop.f32.mrb[0].mxu0
        %1736 = vmatprep.mubr.f32.mxu0 0.0
        %1737 = vmatmul.mubr.f32.gmra.mrb[0].mxu0 %v435
        %v1738 = vpop.f32.mrb[0].mxu0
        %v1739 = vadd.f32 %v954, %v1738
        %v1740 = vpop.f32.mrb[0].mxu0
        %1741 = vmatprep.mubr.f32.mxu0 0.0
        %1742 = vmatmul.mubr.f32.gmra.mrb[0].mxu0 %v438
        %v1743 = vpop.f32.mrb[0].mxu0
        %v1744 = vadd.f32 %v959, %v1743
        %v1745 = vpop.f32.mrb[0].mxu0
        %1746 = vmatprep.mubr.f32.mxu0 0.0
        %1747 = vmatmul.mubr.f32.gmra.mrb[0].mxu0 %v441
        %v1748 = vpop.f32.mrb[0].mxu0
        %v1749 = vadd.f32 %v964, %v1748
        %v1750 = vpop.f32.mrb[0].mxu0
        %1751 = vmatprep.mubr.f32.mxu0 0.0
        %1752 = vmatmul.mubr.f32.gmra.mrb[0].mxu0 %v444
        %v1753 = vpop.f32.mrb[0].mxu0
        %v1754 = vadd.f32 %v969, %v1753
        %v1755 = vpop.f32.mrb[0].mxu0
        %1756 = vmatprep.mubr.f32.mxu0 0.0
        %1757 = vmatmul.mubr.f32.gmra.mrb[0].mxu0 %v447
        %v1758 = vpop.f32.mrb[0].mxu0
        %v1759 = vadd.f32 %v974, %v1758
        %v1760 = vpop.f32.mrb[0].mxu0
        %1761 = vmatprep.mubr.f32.mxu0 0.0
        %1762 = vmatmul.mubr.f32.gmra.mrb[0].mxu0 %v450
        %v1763 = vpop.f32.mrb[0].mxu0
        %v1764 = vadd.f32 %v979, %v1763
        %v1765 = vpop.f32.mrb[0].mxu0
        %1766 = vmatprep.mubr.f32.mxu0 0.0
        %1767 = vmatmul.mubr.f32.gmra.mrb[0].mxu0 %v453
        %v1768 = vpop.f32.mrb[0].mxu0
        %v1769 = vadd.f32 %v984, %v1768
        %v1770 = vpop.f32.mrb[0].mxu0
        %1771 = vmatprep.mubr.f32.mxu0 0.0
        %1772 = vmatmul.mubr.f32.gmra.mrb[0].mxu0 %v456
        %v1773 = vpop.f32.mrb[0].mxu0
        %v1774 = vadd.f32 %v989, %v1773
        %v1775 = vpop.f32.mrb[0].mxu0
        %1776 = vmatprep.mubr.f32.mxu0 0.0
        %1777 = vmatmul.mubr.f32.gmra.mrb[0].mxu0 %v459
        %v1778 = vpop.f32.mrb[0].mxu0
        %v1779 = vadd.f32 %v994, %v1778
        %v1780 = vpop.f32.mrb[0].mxu0
        %1781 = vmatprep.mubr.f32.mxu0 0.0
        %1782 = vmatmul.mubr.f32.gmra.mrb[0].mxu0 %v462
        %v1783 = vpop.f32.mrb[0].mxu0
        %v1784 = vadd.f32 %v999, %v1783
        %v1785 = vpop.f32.mrb[0].mxu0
        %1786 = vmatprep.mubr.f32.mxu0 0.0
        %1787 = vmatmul.mubr.f32.gmra.mrb[0].mxu0 %v465
        %v1788 = vpop.f32.mrb[0].mxu0
        %v1789 = vadd.f32 %v1004, %v1788
        %v1790 = vpop.f32.mrb[0].mxu0
        %1791 = vmatprep.mubr.f32.mxu0 0.0
        %1792 = vmatmul.mubr.f32.gmra.mrb[0].mxu0 %v468
        %v1793 = vpop.f32.mrb[0].mxu0
        %v1794 = vadd.f32 %v1009, %v1793
        %v1795 = vpop.f32.mrb[0].mxu0
        %1796 = vmatprep.mubr.f32.mxu0 0.0
        %1797 = vmatmul.mubr.f32.gmra.mrb[0].mxu0 %v471
        %v1798 = vpop.f32.mrb[0].mxu0
        %v1799 = vadd.f32 %v1014, %v1798
        %v1800 = vpop.f32.mrb[0].mxu0
        %1801 = vmatprep.mubr.f32.mxu0 0.0
        %1802 = vmatmul.mubr.f32.gmra.mrb[0].mxu0 %v474
        %v1803 = vpop.f32.mrb[0].mxu0
        %v1804 = vadd.f32 %v1019, %v1803
        %v1805 = vpop.f32.mrb[0].mxu0
        %1806 = vmatprep.mubr.f32.mxu0 0.0
        %1807 = vmatmul.mubr.f32.gmra.mrb[0].mxu0 %v477
        %v1808 = vpop.f32.mrb[0].mxu0
        %v1809 = vadd.f32 %v1024, %v1808
        %v1810 = vpop.f32.mrb[0].mxu0
        %1811 = vmatprep.mubr.f32.mxu0 0.0
        %1812 = vmatmul.mubr.f32.gmra.mrb[0].mxu0 %v480
        %v1813 = vpop.f32.mrb[0].mxu0
        %v1814 = vadd.f32 %v1029, %v1813
        %v1815 = vpop.f32.mrb[0].mxu0
        %1816 = vmatprep.mubr.f32.mxu0 0.0
        %1817 = vmatmul.mubr.f32.gmra.mrb[0].mxu0 %v483
        %v1818 = vpop.f32.mrb[0].mxu0
        %v1819 = vadd.f32 %v1034, %v1818
        %v1820 = vpop.f32.mrb[0].mxu0
        %1821 = vmatprep.mubr.f32.mxu0 0.0
        %1822 = vmatmul.mubr.f32.gmra.mrb[0].mxu0 %v486
        %v1823 = vpop.f32.mrb[0].mxu0
        %v1824 = vadd.f32 %v1039, %v1823
        %v1825 = vpop.f32.mrb[0].mxu0
        %1826 = vmatprep.mubr.f32.mxu0 0.0
        %1827 = vmatmul.mubr.f32.gmra.mrb[0].mxu0 %v489
        %v1828 = vpop.f32.mrb[0].mxu0
        %v1829 = vadd.f32 %v1044, %v1828
        %v1830 = vpop.f32.mrb[0].mxu0
        %1831 = vmatprep.mubr.f32.mxu0 0.0
        %1832 = vmatmul.mubr.f32.gmra.mrb[0].mxu0 %v492
        %v1833 = vpop.f32.mrb[0].mxu0
        %v1834 = vadd.f32 %v1049, %v1833
        %v1835 = vpop.f32.mrb[0].mxu0
        %1836 = vmatprep.mubr.f32.mxu0 0.0
        %1837 = vmatmul.mubr.f32.gmra.mrb[0].mxu0 %v495
        %v1838 = vpop.f32.mrb[0].mxu0
        %v1839 = vadd.f32 %v1054, %v1838
        %v1840 = vpop.f32.mrb[0].mxu0
        %1841 = vmatprep.mubr.f32.mxu0 0.0
        %1842 = vmatmul.mubr.f32.gmra.mrb[0].mxu0 %v498
        %v1843 = vpop.f32.mrb[0].mxu0
        %v1844 = vadd.f32 %v1059, %v1843
        %v1845 = vpop.f32.mrb[0].mxu0
        %1846 = vmatprep.mubr.f32.mxu0 0.0
        %1847 = vmatmul.mubr.f32.gmra.mrb[0].mxu0 %v501
        %v1848 = vpop.f32.mrb[0].mxu0
        %v1849 = vadd.f32 %v1064, %v1848
        %v1850 = vpop.f32.mrb[0].mxu0
        %1851 = vmatprep.mubr.f32.mxu0 0.0
        %1852 = vmatmul.mubr.f32.gmra.mrb[0].mxu0 %v504
        %v1853 = vpop.f32.mrb[0].mxu0
        %v1854 = vadd.f32 %v1069, %v1853
        %v1855 = vpop.f32.mrb[0].mxu0
        %1856 = vmatprep.mubr.f32.mxu0 0.0
        %1857 = vmatmul.mubr.f32.gmra.mrb[0].mxu0 %v507
        %v1858 = vpop.f32.mrb[0].mxu0
        %v1859 = vadd.f32 %v1074, %v1858
        %v1860 = vpop.f32.mrb[0].mxu0
        %1861 = vmatprep.mubr.f32.mxu0 0.0
        %1862 = vmatmul.mubr.f32.gmra.mrb[0].mxu0 %v510
        %v1863 = vpop.f32.mrb[0].mxu0
        %v1864 = vadd.f32 %v1079, %v1863
        %v1865 = vpop.f32.mrb[0].mxu0
        %1866 = vmatprep.mubr.f32.mxu0 0.0
        %1867 = vmatmul.mubr.f32.gmra.mrb[0].mxu0 %v513
        %v1868 = vpop.f32.mrb[0].mxu0
        %v1869 = vadd.f32 %v1084, %v1868
        %v1870 = vpop.f32.mrb[0].mxu0
        %1871 = vmatprep.mubr.f32.mxu0 0.0
        %1872 = vmatmul.mubr.f32.gmra.mrb[0].mxu0 %v516
        %v1873 = vpop.f32.mrb[0].mxu0
        %v1874 = vadd.f32 %v1089, %v1873
        %v1875 = vpop.f32.mrb[0].mxu0
        %1876 = vmatprep.mubr.f32.mxu0 0.0
        %1877 = vmatmul.mubr.f32.gmra.mrb[0].mxu0 %v519
        %v1878 = vpop.f32.mrb[0].mxu0
        %v1879 = vadd.f32 %v1094, %v1878
        %v1880 = vpop.f32.mrb[0].mxu0
        %1881 = vmatprep.mubr.f32.mxu0 0.0
        %1882 = vmatmul.mubr.f32.gmra.mrb[0].mxu0 %v522
        %v1883 = vpop.f32.mrb[0].mxu0
        %v1884 = vadd.f32 %v1099, %v1883
        %v1885 = vpop.f32.mrb[0].mxu0
        %1886 = vmatprep.mubr.f32.mxu0 0.0
        %1887 = vmatmul.mubr.f32.gmra.mrb[0].mxu0 %v525
        %v1888 = vpop.f32.mrb[0].mxu0
        %v1889 = vadd.f32 %v1104, %v1888
        %v1890 = vpop.f32.mrb[0].mxu0
        %1891 = vmatprep.mubr.f32.mxu0 0.0
        %1892 = vmatmul.mubr.f32.gmra.mrb[0].mxu0 %v528
        %v1893 = vpop.f32.mrb[0].mxu0
        %v1894 = vadd.f32 %v1109, %v1893
        %v1895 = vpop.f32.mrb[0].mxu0
        %1896 = vmatprep.mubr.f32.mxu0 0.0
        %1897 = vmatmul.mubr.f32.gmra.mrb[0].mxu0 %v531
        %v1898 = vpop.f32.mrb[0].mxu0
        %v1899 = vadd.f32 %v1114, %v1898
        %v1900 = vpop.f32.mrb[0].mxu0
        %1901 = vmatprep.mubr.f32.mxu0 0.0
        %1902 = vmatmul.mubr.f32.gmra.mrb[0].mxu0 %v534
        %v1903 = vpop.f32.mrb[0].mxu0
        %v1904 = vadd.f32 %v1119, %v1903
        %v1905 = vpop.f32.mrb[0].mxu0
        %1906 = vmatprep.mubr.f32.mxu0 0.0
        %1907 = vmatmul.mubr.f32.gmra.mrb[0].mxu0 %v537
        %v1908 = vpop.f32.mrb[0].mxu0
        %v1909 = vadd.f32 %v1124, %v1908
        %v1910 = vpop.f32.mrb[0].mxu0
        %1911 = vmatprep.mubr.f32.mxu0 0.0
        %1912 = vmatmul.mubr.f32.gmra.mrb[0].mxu0 %v540
        %v1913 = vpop.f32.mrb[0].mxu0
        %v1914 = vadd.f32 %v1129, %v1913
        %v1915 = vpop.f32.mrb[0].mxu0
        %1916 = vmatprep.mubr.f32.mxu0 0.0
        %1917 = vmatmul.mubr.f32.gmra.mrb[0].mxu0 %v543
        %v1918 = vpop.f32.mrb[0].mxu0
        %v1919 = vadd.f32 %v1134, %v1918
        %v1920 = vpop.f32.mrb[0].mxu0
        %1921 = vmatprep.mubr.f32.mxu0 0.0
        %1922 = vmatmul.mubr.f32.gmra.mrb[0].mxu0 %v546
        %v1923 = vpop.f32.mrb[0].mxu0
        %v1924 = vadd.f32 %v1139, %v1923
        %v1925 = vpop.f32.mrb[0].mxu0
        %1926 = vmatprep.mubr.f32.mxu0 0.0
        %1927 = vmatmul.mubr.f32.gmra.mrb[0].mxu0 %v549
        %v1928 = vpop.f32.mrb[0].mxu0
        %v1929 = vadd.f32 %v1144, %v1928
        %v1930 = vpop.f32.mrb[0].mxu0
        %1931 = vmatprep.mubr.f32.mxu0 0.0
        %1932 = vmatmul.mubr.f32.gmra.mrb[0].mxu0 %v552
        %v1933 = vpop.f32.mrb[0].mxu0
        %v1934 = vadd.f32 %v1149, %v1933
        %v1935 = vpop.f32.mrb[0].mxu0
        %1936 = vmatprep.mubr.f32.mxu0 0.0
        %1937 = vmatmul.mubr.f32.gmra.mrb[0].mxu0 %v555
        %v1938 = vpop.f32.mrb[0].mxu0
        %v1939 = vadd.f32 %v1154, %v1938
        %v1940 = vpop.f32.mrb[0].mxu0
        %1941 = vmatprep.mubr.f32.mxu0 0.0
        %1942 = vmatmul.mubr.f32.gmra.mrb[0].mxu0 %v558
        %v1943 = vpop.f32.mrb[0].mxu0
        %v1944 = vadd.f32 %v1159, %v1943
        %v1945 = vpop.f32.mrb[0].mxu0
        %1946 = vmatprep.mubr.f32.mxu0 0.0
        %1947 = vmatmul.mubr.f32.gmra.mrb[0].mxu0 %v561
        %v1948 = vpop.f32.mrb[0].mxu0
        %v1949 = vadd.f32 %v1164, %v1948
        %v1950 = vpop.f32.mrb[0].mxu0
        %1951 = vmatprep.mubr.f32.mxu0 0.0
        %1952 = vmatmul.mubr.f32.gmra.mrb[0].mxu0 %v564
        %v1953 = vpop.f32.mrb[0].mxu0
        %v1954 = vadd.f32 %v1169, %v1953
        %v1955 = vpop.f32.mrb[0].mxu0
        %1956 = vmatprep.mubr.f32.mxu0 0.0
        %1957 = vmatmul.mubr.f32.gmra.mrb[0].mxu0 %v567
        %v1958 = vpop.f32.mrb[0].mxu0
        %v1959 = vadd.f32 %v1174, %v1958
        %v1960 = vpop.f32.mrb[0].mxu0
        %1961 = vmatprep.mubr.f32.mxu0 0.0
        %1962 = vmatmul.mubr.f32.gmra.mrb[0].mxu0 %v570
        %v1963 = vpop.f32.mrb[0].mxu0
        %v1964 = vadd.f32 %v1179, %v1963
        %v1965 = vpop.f32.mrb[0].mxu0
        %1966 = vmatprep.mubr.f32.mxu0 0.0
        %1967 = vmatmul.mubr.f32.gmra.mrb[0].mxu0 %v573
        %v1968 = vpop.f32.mrb[0].mxu0
        %v1969 = vadd.f32 %v1184, %v1968
        %v1970 = vpop.f32.mrb[0].mxu0
        %1971 = vmatprep.mubr.f32.mxu0 0.0
        %1972 = vmatmul.mubr.f32.gmra.mrb[0].mxu0 %v576
        %v1973 = vpop.f32.mrb[0].mxu0
        %v1974 = vadd.f32 %v1189, %v1973
        %v1975 = vpop.f32.mrb[0].mxu0
        %1976 = vmatprep.mubr.f32.mxu0 0.0
        %1977 = vmatmul.mubr.f32.gmra.mrb[0].mxu0 %v579
        %v1978 = vpop.f32.mrb[0].mxu0
        %v1979 = vadd.f32 %v1194, %v1978
        %v1980 = vpop.f32.mrb[0].mxu0
        %1981 = vmatprep.mubr.f32.mxu0 0.0
        %1982 = vmatmul.mubr.f32.gmra.mrb[0].mxu0 %v582
        %v1983 = vpop.f32.mrb[0].mxu0
        %v1984 = vadd.f32 %v1199, %v1983
        %v1985 = vpop.f32.mrb[0].mxu0
        %1986 = vmatprep.mubr.f32.mxu0 0.0
        %1987 = vmatmul.mubr.f32.gmra.mrb[0].mxu0 %v585
        %v1988 = vpop.f32.mrb[0].mxu0
        %v1989 = vadd.f32 %v1204, %v1988
        %v1990 = vpop.f32.mrb[0].mxu0
        %1991 = vmatprep.mubr.f32.mxu0 0.0
        %1992 = vmatmul.mubr.f32.gmra.mrb[0].mxu0 %v588
        %v1993 = vpop.f32.mrb[0].mxu0
        %v1994 = vadd.f32 %v1209, %v1993
        %v1995 = vpop.f32.mrb[0].mxu0
        %1996 = vmatprep.mubr.f32.mxu0 0.0
        %1997 = vmatmul.mubr.f32.gmra.mrb[0].mxu0 %v591
        %v1998 = vpop.f32.mrb[0].mxu0
        %v1999 = vadd.f32 %v1214, %v1998
        %v2000 = vpop.f32.mrb[0].mxu0
        %2001 = vmatprep.mubr.f32.mxu0 0.0
        %2002 = vmatmul.mubr.f32.gmra.mrb[0].mxu0 %v594
        %v2003 = vpop.f32.mrb[0].mxu0
        %v2004 = vadd.f32 %v1219, %v2003
        %v2005 = vpop.f32.mrb[0].mxu0
        %2006 = vmatprep.mubr.f32.mxu0 0.0
        %2007 = vmatmul.mubr.f32.gmra.mrb[0].mxu0 %v597
        %v2008 = vpop.f32.mrb[0].mxu0
        %v2009 = vadd.f32 %v1224, %v2008
        %v2010 = vpop.f32.mrb[0].mxu0
        %2011 = vmatprep.mubr.f32.mxu0 0.0
        %2012 = vmatmul.mubr.f32.gmra.mrb[0].mxu0 %v600
        %v2013 = vpop.f32.mrb[0].mxu0
        %v2014 = vadd.f32 %v1229, %v2013
        %v2015 = vpop.f32.mrb[0].mxu0
        %2016 = vmatprep.mubr.f32.mxu0 0.0
        %2017 = vmatmul.mubr.f32.gmra.mrb[0].mxu0 %v603
        %v2018 = vpop.f32.mrb[0].mxu0
        %v2019 = vadd.f32 %v1234, %v2018
        %v2020 = vpop.f32.mrb[0].mxu0
        %2021 = vmatprep.mubr.f32.mxu0 0.0
        %2022 = vmatmul.mubr.f32.gmra.mrb[0].mxu0 %v606
        %v2023 = vpop.f32.mrb[0].mxu0
        %v2024 = vadd.f32 %v1239, %v2023
        %v2025 = vpop.f32.mrb[0].mxu0
        %2026 = vmatprep.mubr.f32.mxu0 0.0
        %2027 = vmatmul.mubr.f32.gmra.mrb[0].mxu0 %v609
        %v2028 = vpop.f32.mrb[0].mxu0
        %v2029 = vadd.f32 %v1244, %v2028
        %v2030 = vpop.f32.mrb[0].mxu0
        %2031 = vmatprep.mubr.f32.mxu0 0.0
        %2032 = vmatmul.mubr.f32.gmra.mrb[0].mxu0 %v612
        %v2033 = vpop.f32.mrb[0].mxu0
        %v2034 = vadd.f32 %v1249, %v2033
        %v2035 = vpop.f32.mrb[0].mxu0
        %2036 = vmatprep.mubr.f32.mxu0 0.0
        %2037 = vmatmul.mubr.f32.gmra.mrb[0].mxu0 %v615
        %v2038 = vpop.f32.mrb[0].mxu0
        %v2039 = vadd.f32 %v1254, %v2038
        %v2040 = vpop.f32.mrb[0].mxu0
        %2041 = vmatprep.mubr.f32.mxu0 0.0
        %2042 = vmatmul.mubr.f32.gmra.mrb[0].mxu0 %v618
        %v2043 = vpop.f32.mrb[0].mxu0
        %v2044 = vadd.f32 %v1259, %v2043
        %v2045 = vpop.f32.mrb[0].mxu0
        %2046 = vmatprep.mubr.f32.mxu0 0.0
        %2047 = vmatmul.mubr.f32.gmra.mrb[0].mxu0 %v621
        %v2048 = vpop.f32.mrb[0].mxu0
        %v2049 = vadd.f32 %v1264, %v2048
        %v2050 = vpop.f32.mrb[0].mxu0
        %2051 = vmatprep.mubr.f32.mxu0 0.0
        %2052 = vmatmul.mubr.f32.gmra.mrb[0].mxu0 %v624
        %v2053 = vpop.f32.mrb[0].mxu0
        %v2054 = vadd.f32 %v1269, %v2053
        %v2055 = vpop.f32.mrb[0].mxu0
        %2056 = vmatprep.mubr.f32.mxu0 0.0
        %2057 = vmatmul.mubr.f32.gmra.mrb[0].mxu0 %v627
        %v2058 = vpop.f32.mrb[0].mxu0
        %v2059 = vadd.f32 %v1274, %v2058
        %v2060 = vpop.f32.mrb[0].mxu0
        %2061 = vmatprep.mubr.f32.mxu0 0.0
        %2062 = vmatmul.mubr.f32.gmra.mrb[0].mxu0 %v630
        %v2063 = vpop.f32.mrb[0].mxu0
        %v2064 = vadd.f32 %v1279, %v2063
        %v2065 = vpop.f32.mrb[0].mxu0
        %2066 = vmatprep.mubr.f32.mxu0 0.0
        %2067 = vmatmul.mubr.f32.gmra.mrb[0].mxu0 %v633
        %v2068 = vpop.f32.mrb[0].mxu0
        %v2069 = vadd.f32 %v1284, %v2068
        %v2070 = vpop.f32.mrb[0].mxu0
        %2071 = vmatprep.mubr.f32.mxu0 0.0
        %2072 = vmatmul.mubr.f32.gmra.mrb[0].mxu0 %v636
        %v2073 = vpop.f32.mrb[0].mxu0
        %v2074 = vadd.f32 %v1289, %v2073
        %v2075 = vpop.f32.mrb[0].mxu0
        %2076 = vmatprep.mubr.f32.mxu0 0.0
        %2077 = vmatmul.mubr.f32.gmra.mrb[0].mxu0 %v639
        %v2078 = vpop.f32.mrb[0].mxu0
        %v2079 = vadd.f32 %v1294, %v2078
        %v2080 = vpop.f32.mrb[0].mxu0
        %2081 = vmatprep.mubr.f32.mxu0 0.0
        %2082 = vmatmul.mubr.f32.gmra.mrb[0].mxu0 %v642
        %v2083 = vpop.f32.mrb[0].mxu0
        %v2084 = vadd.f32 %v1299, %v2083
        %v2085 = vpop.f32.mrb[0].mxu0
        %2086 = vmatprep.mubr.f32.mxu0 0.0
        %2087 = vmatmul.mubr.f32.gmra.mrb[0].mxu0 %v645
        %v2088 = vpop.f32.mrb[0].mxu0
        %v2089 = vadd.f32 %v1304, %v2088
        %v2090 = vpop.f32.mrb[0].mxu0
        %2091 = vmatprep.mubr.f32.mxu0 0.0
        %2092 = vmatmul.mubr.f32.gmra.mrb[0].mxu0 %v648
        %v2093 = vpop.f32.mrb[0].mxu0
        %v2094 = vadd.f32 %v1309, %v2093
        %v2095 = vpop.f32.mrb[0].mxu0
        %2096 = vmatprep.mubr.f32.mxu0 0.0
        %2097 = vmatmul.mubr.f32.gmra.mrb[0].mxu0 %v651
        %v2098 = vpop.f32.mrb[0].mxu0
        %v2099 = vadd.f32 %v1314, %v2098
        %v2100 = vpop.f32.mrb[0].mxu0
        %2101 = vmatprep.mubr.f32.mxu0 0.0
        %2102 = vmatmul.mubr.f32.gmra.mrb[0].mxu0 %v654
        %v2103 = vpop.f32.mrb[0].mxu0
        %v2104 = vadd.f32 %v1319, %v2103
        %v2105 = vpop.f32.mrb[0].mxu0
        %2106 = vmatprep.mubr.f32.mxu0 0.0
        %2107 = vmatmul.mubr.f32.gmra.mrb[0].mxu0 %v657
        %v2108 = vpop.f32.mrb[0].mxu0
        %v2109 = vadd.f32 %v1324, %v2108
        %v2110 = vpop.f32.mrb[0].mxu0
        %2111 = vmatprep.mubr.f32.mxu0 0.0
        %2112 = vmatmul.mubr.f32.gmra.mrb[0].mxu0 %v660
        %v2113 = vpop.f32.mrb[0].mxu0
        %v2114 = vadd.f32 %v1329, %v2113
        %v2115 = vpop.f32.mrb[0].mxu0
        %2116 = vmatprep.mubr.f32.mxu0 0.0
        %2117 = vmatmul.mubr.f32.gmra.mrb[0].mxu0 %v663
        %v2118 = vpop.f32.mrb[0].mxu0
        %v2119 = vadd.f32 %v1334, %v2118
        %v2120 = vpop.f32.mrb[0].mxu0
        %2121 = vmatprep.mubr.f32.mxu0 0.0
        %2122 = vmatmul.mubr.f32.gmra.mrb[0].mxu0 %v666
        %v2123 = vpop.f32.mrb[0].mxu0
        %v2124 = vadd.f32 %v1339, %v2123
        %v2125 = vpop.f32.mrb[0].mxu0
        %2126 = vmatprep.mubr.f32.mxu0 0.0
        %2127 = vmatmul.mubr.f32.gmra.mrb[0].mxu0 %v669
        %v2128 = vpop.f32.mrb[0].mxu0
        %v2129 = vadd.f32 %v1344, %v2128
        %v2130 = vpop.f32.mrb[0].mxu0
        %2131 = vmatprep.mubr.f32.mxu0 0.0
        %2132 = vmatmul.mubr.f32.gmra.mrb[0].mxu0 %v672
        %v2133 = vpop.f32.mrb[0].mxu0
        %v2134 = vadd.f32 %v1349, %v2133
        %v2135 = vpop.f32.mrb[0].mxu0
        %2136 = vmatprep.mubr.f32.mxu0 0.0
        %2137 = vmatmul.mubr.f32.gmra.mrb[0].mxu0 %v675
        %v2138 = vpop.f32.mrb[0].mxu0
        %v2139 = vadd.f32 %v1354, %v2138
        %v2140 = vpop.f32.mrb[0].mxu0
        %2141 = vmatprep.mubr.f32.mxu0 0.0
        %2142 = vmatmul.mubr.f32.gmra.mrb[0].mxu0 %v678
        %v2143 = vpop.f32.mrb[0].mxu0
        %v2144 = vadd.f32 %v1359, %v2143
        %v2145 = vpop.f32.mrb[0].mxu0
        %2146 = vmatprep.mubr.f32.mxu0 0.0
        %2147 = vmatmul.mubr.f32.gmra.mrb[0].mxu0 %v681
        %v2148 = vpop.f32.mrb[0].mxu0
        %v2149 = vadd.f32 %v1364, %v2148
        %v2150 = vpop.f32.mrb[0].mxu0
        %2151 = vmatprep.mubr.f32.mxu0 0.0
        %2152 = vmatmul.mubr.f32.gmra.mrb[0].mxu0 %v684
        %v2153 = vpop.f32.mrb[0].mxu0
        %v2154 = vadd.f32 %v1369, %v2153
        %v2155 = vpop.f32.mrb[0].mxu0
        %2156 = vmatprep.mubr.f32.mxu0 0.0
        %2157 = vmatmul.mubr.f32.gmra.mrb[0].mxu0 %v687
        %v2158 = vpop.f32.mrb[0].mxu0
        %v2159 = vadd.f32 %v1374, %v2158
        %v2160 = vpop.f32.mrb[0].mxu0
        %2161 = vmatprep.mubr.f32.mxu0 0.0
        %2162 = vmatmul.mubr.f32.gmra.mrb[0].mxu0 %v690
        %v2163 = vpop.f32.mrb[0].mxu0
        %v2164 = vadd.f32 %v1379, %v2163
        %v2165 = vpop.f32.mrb[0].mxu0
        %2166 = vmatprep.mubr.f32.mxu0 0.0
        %2167 = vmatmul.mubr.f32.gmra.mrb[0].mxu0 %v693
        %v2168 = vpop.f32.mrb[0].mxu0
        %v2169 = vadd.f32 %v1384, %v2168
        %v2170 = vpop.f32.mrb[0].mxu0
        %2171 = vmatprep.mubr.f32.mxu0 0.0
        %2172 = vmatmul.mubr.f32.gmra.mrb[0].mxu0 %v696
        %v2173 = vpop.f32.mrb[0].mxu0
        %v2174 = vadd.f32 %v1389, %v2173
        %v2175 = vpop.f32.mrb[0].mxu0
        %2176 = vmatprep.mubr.f32.mxu0 0.0
        %2177 = vmatmul.mubr.f32.gmra.mrb[0].mxu0 %v699
        %v2178 = vpop.f32.mrb[0].mxu0
        %v2179 = vadd.f32 %v1394, %v2178
        %v2180 = vpop.f32.mrb[0].mxu0
        %2181 = vmatprep.mubr.f32.mxu0 0.0
        %2182 = vmatmul.mubr.f32.gmra.mrb[0].mxu0 %v702
        %v2183 = vpop.f32.mrb[0].mxu0
        %v2184 = vadd.f32 %v1399, %v2183
        %v2185 = vpop.f32.mrb[0].mxu0
        %2186 = vmatprep.mubr.f32.mxu0 0.0
        %2187 = vmatmul.mubr.f32.gmra.mrb[0].mxu0 %v705
        %v2188 = vpop.f32.mrb[0].mxu0
        %v2189 = vadd.f32 %v1404, %v2188
        %v2190 = vpop.f32.mrb[0].mxu0
        %2191 = vmatprep.mubr.f32.mxu0 0.0
        %2192 = vmatmul.mubr.f32.gmra.mrb[0].mxu0 %v708
        %v2193 = vpop.f32.mrb[0].mxu0
        %v2194 = vadd.f32 %v1409, %v2193
        %v2195 = vpop.f32.mrb[0].mxu0
        %2196 = vmatprep.mubr.f32.mxu0 0.0
        %2197 = vmatmul.mubr.f32.gmra.mrb[0].mxu0 %v711
        %v2198 = vpop.f32.mrb[0].mxu0
        %v2199 = vadd.f32 %v1414, %v2198
        %v2200 = vpop.f32.mrb[0].mxu0
        %2201 = vmatprep.mubr.f32.mxu0 0.0
        %2202 = vmatmul.mubr.f32.gmra.mrb[0].mxu0 %v714
        %v2203 = vpop.f32.mrb[0].mxu0
        %v2204 = vadd.f32 %v1419, %v2203
        %v2205 = vpop.f32.mrb[0].mxu0
        %2206 = vmatprep.mubr.f32.mxu0 0.0
        %2207 = vmatmul.mubr.f32.gmra.mrb[0].mxu0 %v717
        %v2208 = vpop.f32.mrb[0].mxu0
        %v2209 = vadd.f32 %v1424, %v2208
        %v2210 = vpop.f32.mrb[0].mxu0
        %2211 = vmatprep.mubr.f32.mxu0 0.0
        %2212 = vmatmul.mubr.f32.gmra.mrb[0].mxu0 %v720
        %v2213 = vpop.f32.mrb[0].mxu0
        %v2214 = vadd.f32 %v1429, %v2213
        %v2215 = vpop.f32.mrb[0].mxu0
        %2216 = vmatprep.mubr.f32.mxu0 0.0
        %2217 = vmatmul.mubr.f32.gmra.mrb[0].mxu0 %v723
        %v2218 = vpop.f32.mrb[0].mxu0
        %v2219 = vadd.f32 %v1434, %v2218
        %v2220 = vpop.f32.mrb[0].mxu0
        %2221 = vmatprep.mubr.f32.mxu0 0.0
        %2222 = vmatmul.mubr.f32.gmra.mrb[0].mxu0 %v726
        %v2223 = vpop.f32.mrb[0].mxu0
        %v2224 = vadd.f32 %v1439, %v2223
        %v2225 = vpop.f32.mrb[0].mxu0
        %2226 = vmatprep.mubr.f32.mxu0 0.0
        %2227 = vmatmul.mubr.f32.gmra.mrb[0].mxu0 %v729
        %v2228 = vpop.f32.mrb[0].mxu0
        %v2229 = vadd.f32 %v1444, %v2228
        %v2230 = vpop.f32.mrb[0].mxu0
        %2231 = vmatprep.mubr.f32.mxu0 0.0
        %2232 = vmatmul.mubr.f32.gmra.mrb[0].mxu0 %v732
        %v2233 = vpop.f32.mrb[0].mxu0
        %v2234 = vadd.f32 %v1449, %v2233
        %v2235 = vpop.f32.mrb[0].mxu0
        %2236 = vmatprep.mubr.f32.mxu0 0.0
        %2237 = vmatmul.mubr.f32.gmra.mrb[0].mxu0 %v735
        %v2238 = vpop.f32.mrb[0].mxu0
        %v2239 = vadd.f32 %v1454, %v2238
        %v2240 = vpop.f32.mrb[0].mxu0
        %2241 = vmatprep.mubr.f32.mxu0 0.0
        %2242 = vmatmul.mubr.f32.gmra.mrb[0].mxu0 %v738
        %v2243 = vpop.f32.mrb[0].mxu0
        %v2244 = vadd.f32 %v1459, %v2243
        %v2245 = vpop.f32.mrb[0].mxu0
        %2246 = vmatprep.mubr.f32.mxu0 0.0
        %2247 = vmatmul.mubr.f32.gmra.mrb[0].mxu0 %v741
        %v2248 = vpop.f32.mrb[0].mxu0
        %v2249 = vadd.f32 %v1464, %v2248
        %v2250 = vpop.f32.mrb[0].mxu0
        %2251 = vmatprep.mubr.f32.mxu0 0.0
        %2252 = vmatmul.mubr.f32.gmra.mrb[0].mxu0 %v744
        %v2253 = vpop.f32.mrb[0].mxu0
        %v2254 = vadd.f32 %v1469, %v2253
        %v2255 = vpop.f32.mrb[0].mxu0
        %2256 = vmatprep.mubr.f32.mxu0 0.0
        %2257 = vmatmul.mubr.f32.gmra.mrb[0].mxu0 %v747
        %v2258 = vpop.f32.mrb[0].mxu0
        %v2259 = vadd.f32 %v1474, %v2258
        %v2260 = vpop.f32.mrb[0].mxu0
        %2261 = vmatprep.mubr.f32.mxu0 0.0
        %2262 = vmatmul.mubr.f32.gmra.mrb[0].mxu0 %v750
        %v2263 = vpop.f32.mrb[0].mxu0
        %v2264 = vadd.f32 %v1479, %v2263
        %v2265 = vpop.f32.mrb[0].mxu0
        %2266 = vmatprep.mubr.f32.mxu0 0.0
        %2267 = vmatmul.mubr.f32.gmra.mrb[0].mxu0 %v753
        %v2268 = vpop.f32.mrb[0].mxu0
        %v2269 = vadd.f32 %v1484, %v2268
        %v2270 = vpop.f32.mrb[0].mxu0
        %2271 = vmatprep.mubr.f32.mxu0 0.0
        %2272 = vmatmul.mubr.f32.gmra.mrb[0].mxu0 %v756
        %v2273 = vpop.f32.mrb[0].mxu0
        %v2274 = vadd.f32 %v1489, %v2273
        %v2275 = vpop.f32.mrb[0].mxu0
        %2276 = vmatprep.mubr.f32.mxu0 0.0
        %2277 = vmatmul.mubr.f32.gmra.mrb[0].mxu0 %v759
        %v2278 = vpop.f32.mrb[0].mxu0
        %v2279 = vadd.f32 %v1494, %v2278
        %v2280 = vpop.f32.mrb[0].mxu0
        %2281 = vmatprep.mubr.f32.mxu0 0.0
        %2282 = vmatmul.mubr.f32.gmra.mrb[0].mxu0 %v762
        %v2283 = vpop.f32.mrb[0].mxu0
        %v2284 = vadd.f32 %v1499, %v2283
        %v2285 = vpop.f32.mrb[0].mxu0
        %2286 = vmatprep.mubr.f32.mxu0 0.0
        %2287 = vmatmul.mubr.f32.gmra.mrb[0].mxu0 %v765
        %v2288 = vpop.f32.mrb[0].mxu0
        %v2289 = vadd.f32 %v1504, %v2288
        %v2290 = vpop.f32.mrb[0].mxu0
        %2291 = vmatprep.mubr.f32.mxu0 0.0
        %2292 = vmatmul.mubr.f32.gmra.mrb[0].mxu0 %v768
        %v2293 = vpop.f32.mrb[0].mxu0
        %v2294 = vadd.f32 %v1509, %v2293
        %v2295 = vpop.f32.mrb[0].mxu0
        %2296 = vmatprep.mubr.f32.mxu0 0.0
        %2297 = vmatmul.mubr.f32.gmra.mrb[0].mxu0 %v771
        %v2298 = vpop.f32.mrb[0].mxu0
        %v2299 = vadd.f32 %v1514, %v2298
        %v2300 = vpop.f32.mrb[0].mxu0
        %2301 = vmatprep.mubr.f32.mxu0 0.0
        %2302 = vmatmul.mubr.f32.gmra.mrb[0].mxu0 %v774
        %v2303 = vpop.f32.mrb[0].mxu0
        %v2304 = vadd.f32 %v1519, %v2303
        %v2305 = vpop.f32.mrb[0].mxu0
        %2306 = vmatprep.mubr.f32.mxu0 0.0
        %2307 = vmatmul.mubr.f32.gmra.mrb[0].mxu0 %v777
        %v2308 = vpop.f32.mrb[0].mxu0
        %v2309 = vadd.f32 %v1524, %v2308
        %v2310 = vpop.f32.mrb[0].mxu0
        %2311 = vmatprep.mubr.f32.mxu0 0.0
        %2312 = vmatmul.mubr.f32.gmra.mrb[0].mxu0 %v780
        %v2313 = vpop.f32.mrb[0].mxu0
        %v2314 = vadd.f32 %v1529, %v2313
        %v2315 = vpop.f32.mrb[0].mxu0
        %2316 = vmatprep.mubr.f32.mxu0 0.0
        %2317 = vmatmul.mubr.f32.gmra.mrb[0].mxu0 %v783
        %v2318 = vpop.f32.mrb[0].mxu0
        %v2319 = vadd.f32 %v1534, %v2318
        %v2320 = vpop.f32.mrb[0].mxu0
        %2321 = vmatprep.mubr.f32.mxu0 0.0
        %2322 = vmatmul.mubr.f32.gmra.mrb[0].mxu0 %v786
        %v2323 = vpop.f32.mrb[0].mxu0
        %v2324 = vadd.f32 %v1539, %v2323
        %v2325 = vpop.f32.mrb[0].mxu0
        %2326 = vmatprep.mubr.f32.mxu0 0.0
        %2327 = vmatmul.mubr.f32.gmra.mrb[0].mxu0 %v789
        %v2328 = vpop.f32.mrb[0].mxu0
        %v2329 = vadd.f32 %v1544, %v2328
        %v2330 = vpop.f32.mrb[0].mxu0
        %2331 = vmatprep.mubr.f32.mxu0 0.0
        %2332 = vmatmul.mubr.f32.gmra.mrb[0].mxu0 %v792
        %v2333 = vpop.f32.mrb[0].mxu0
        %v2334 = vadd.f32 %v1549, %v2333
        %v2335 = vpop.f32.mrb[0].mxu0
        %2336 = vmatprep.mubr.f32.mxu0 0.0
        %2337 = vmatmul.mubr.f32.gmra.mrb[0].mxu0 %v795
        %v2338 = vpop.f32.mrb[0].mxu0
        %v2339 = vadd.f32 %v1554, %v2338
        %v2340 = vpop.f32.mrb[0].mxu0
        %2341 = vmatprep.mubr.f32.mxu0 0.0
        %2342 = vmatmul.mubr.f32.gmra.mrb[0].mxu0 %v798
        %v2343 = vpop.f32.mrb[0].mxu0
        %v2344 = vadd.f32 %v1559, %v2343
        %v2345 = vpop.f32.mrb[0].mxu0
        %2346 = vmatprep.mubr.f32.mxu0 0.0
        %2347 = vmatmul.mubr.f32.gmra.mrb[0].mxu0 %v801
        %v2348 = vpop.f32.mrb[0].mxu0
        %v2349 = vadd.f32 %v1564, %v2348
        %v2350 = vpop.f32.mrb[0].mxu0
        %2351 = vmatprep.mubr.f32.mxu0 0.0
        %2352 = vmatmul.mubr.f32.gmra.mrb[0].mxu0 %v804
        %v2353 = vpop.f32.mrb[0].mxu0
        %v2354 = vadd.f32 %v1569, %v2353
        %v2355 = vpop.f32.mrb[0].mxu0
        %2356 = vmatprep.mubr.f32.mxu0 0.0
        %2357 = vmatmul.mubr.f32.gmra.mrb[0].mxu0 %v807
        %v2358 = vpop.f32.mrb[0].mxu0
        %v2359 = vadd.f32 %v1574, %v2358
        %v2360 = vpop.f32.mrb[0].mxu0
        %2361 = vmatprep.mubr.f32.mxu0 0.0
        %2362 = vmatmul.mubr.f32.gmra.mrb[0].mxu0 %v810
        %v2363 = vpop.f32.mrb[0].mxu0
        %v2364 = vadd.f32 %v1579, %v2363
        %v2365 = vpop.f32.mrb[0].mxu0
        %2366 = vmatprep.mubr.f32.mxu0 0.0
        %2367 = vmatmul.mubr.f32.gmra.mrb[0].mxu0 %v813
        %v2368 = vpop.f32.mrb[0].mxu0
        %v2369 = vadd.f32 %v1584, %v2368
        %v2370 = vpop.f32.mrb[0].mxu0
        %2371 = vmatprep.mubr.f32.mxu0 0.0
        %2372 = vmatmul.mubr.f32.gmra.mrb[0].mxu0 %v816
        %v2373 = vpop.f32.mrb[0].mxu0
        %v2374 = vadd.f32 %v1589, %v2373
        %v2375 = vpop.f32.mrb[0].mxu0
        %2376 = vmatprep.mubr.f32.mxu0 0.0
        %2377 = vmatmul.mubr.f32.gmra.mrb[0].mxu0 %v819
        %v2378 = vpop.f32.mrb[0].mxu0
        %v2379 = vadd.f32 %v1594, %v2378
        %v2380 = vpop.f32.mrb[0].mxu0
        %2381 = vmatprep.mubr.f32.mxu0 0.0
        %2382 = vmatmul.mubr.f32.gmra.mrb[0].mxu0 %v822
        %v2383 = vpop.f32.mrb[0].mxu0
        %v2384 = vadd.f32 %v1599, %v2383
        %v2385 = vpop.f32.mrb[0].mxu0
        %2386 = vmatprep.mubr.f32.mxu0 0.0
        %2387 = vmatmul.mubr.f32.gmra.mrb[0].mxu0 %v825
        %v2388 = vpop.f32.mrb[0].mxu0
        %v2389 = vadd.f32 %v1604, %v2388
        %v2390 = vpop.f32.mrb[0].mxu0
        %2391 = vmatprep.mubr.f32.mxu0 0.0
        %2392 = vmatmul.mubr.f32.gmra.mrb[0].mxu0 %v828
        %v2393 = vpop.f32.mrb[0].mxu0
        %v2394 = vadd.f32 %v1609, %v2393
        %v2395 = vpop.f32.mrb[0].mxu0
        %2396 = vmatprep.mubr.f32.mxu0 0.0
        %2397 = vmatmul.mubr.f32.gmra.mrb[0].mxu0 %v831
        %v2398 = vpop.f32.mrb[0].mxu0
        %v2399 = vadd.f32 %v1614, %v2398
        %v2400 = vpop.f32.mrb[0].mxu0
        %2401 = vdwg.mxu0
        %vm2402 = vcmask 400384
        %2403 = vst.msk [vmem:[%s254] sm:$0xff] %vm2402, %v1684
        %2404 = vst.msk [vmem:[%s254 + $0x8] sm:$0xff] %vm2402, %v1689
        %2405 = vst.msk [vmem:[%s254 + $0x10] sm:$0xff] %vm2402, %v1694
        %2406 = vst.msk [vmem:[%s254 + $0x18] sm:$0xff] %vm2402, %v1699
        %2407 = vst.msk [vmem:[%s254 + $0x20] sm:$0xff] %vm2402, %v1704
        %2408 = vst.msk [vmem:[%s254 + $0x28] sm:$0xff] %vm2402, %v1709
        %2409 = vst.msk [vmem:[%s254 + $0x30] sm:$0xff] %vm2402, %v1714
        %2410 = vst.msk [vmem:[%s254 + $0x38] sm:$0xff] %vm2402, %v1719
        %2411 = vst.msk [vmem:[%s254 + $0x40] sm:$0xff] %vm2402, %v1724
        %2412 = vst.msk [vmem:[%s254 + $0x48] sm:$0xff] %vm2402, %v1729
        %2413 = vst.msk [vmem:[%s254 + $0x50] sm:$0xff] %vm2402, %v1734
        %2414 = vst.msk [vmem:[%s254 + $0x58] sm:$0xff] %vm2402, %v1739
        %2415 = vst.msk [vmem:[%s254 + $0x60] sm:$0xff] %vm2402, %v1744
        %2416 = vst.msk [vmem:[%s254 + $0x68] sm:$0xff] %vm2402, %v1749
        %2417 = vst.msk [vmem:[%s254 + $0x70] sm:$0xff] %vm2402, %v1754
        %2418 = vst.msk [vmem:[%s254 + $0x78] sm:$0xff] %vm2402, %v1759
        %2419 = vst.msk [vmem:[%s254 + $0x80] sm:$0xff] %vm2402, %v1764
        %2420 = vst.msk [vmem:[%s254 + $0x88] sm:$0xff] %vm2402, %v1769
        %2421 = vst.msk [vmem:[%s254 + $0x90] sm:$0xff] %vm2402, %v1774
        %2422 = vst.msk [vmem:[%s254 + $0x98] sm:$0xff] %vm2402, %v1779
        %2423 = vst.msk [vmem:[%s254 + $0xa0] sm:$0xff] %vm2402, %v1784
        %2424 = vst.msk [vmem:[%s254 + $0xa8] sm:$0xff] %vm2402, %v1789
        %2425 = vst.msk [vmem:[%s254 + $0xb0] sm:$0xff] %vm2402, %v1794
        %2426 = vst.msk [vmem:[%s254 + $0xb8] sm:$0xff] %vm2402, %v1799
        %2427 = vst.msk [vmem:[%s254 + $0xc0] sm:$0xff] %vm2402, %v1804
        %2428 = vst.msk [vmem:[%s254 + $0xc8] sm:$0xff] %vm2402, %v1809
        %2429 = vst.msk [vmem:[%s254 + $0xd0] sm:$0xff] %vm2402, %v1814
        %2430 = vst.msk [vmem:[%s254 + $0xd8] sm:$0xff] %vm2402, %v1819
        %2431 = vst.msk [vmem:[%s254 + $0xe0] sm:$0xff] %vm2402, %v1824
        %2432 = vst.msk [vmem:[%s254 + $0xe8] sm:$0xff] %vm2402, %v1829
        %2433 = vst.msk [vmem:[%s254 + $0xf0] sm:$0xff] %vm2402, %v1834
        %2434 = vst.msk [vmem:[%s254 + $0xf8] sm:$0xff] %vm2402, %v1839
        %2435 = vst.msk [vmem:[%s254 + $0x100] sm:$0xff] %vm2402, %v1844
        %2436 = vst.msk [vmem:[%s254 + $0x108] sm:$0xff] %vm2402, %v1849
        %2437 = vst.msk [vmem:[%s254 + $0x110] sm:$0xff] %vm2402, %v1854
        %2438 = vst.msk [vmem:[%s254 + $0x118] sm:$0xff] %vm2402, %v1859
        %2439 = vst.msk [vmem:[%s254 + $0x120] sm:$0xff] %vm2402, %v1864
        %2440 = vst.msk [vmem:[%s254 + $0x128] sm:$0xff] %vm2402, %v1869
        %2441 = vst.msk [vmem:[%s254 + $0x130] sm:$0xff] %vm2402, %v1874
        %2442 = vst.msk [vmem:[%s254 + $0x138] sm:$0xff] %vm2402, %v1879
        %2443 = vst.msk [vmem:[%s254 + $0x140] sm:$0xff] %vm2402, %v1884
        %2444 = vst.msk [vmem:[%s254 + $0x148] sm:$0xff] %vm2402, %v1889
        %2445 = vst.msk [vmem:[%s254 + $0x150] sm:$0xff] %vm2402, %v1894
        %2446 = vst.msk [vmem:[%s254 + $0x158] sm:$0xff] %vm2402, %v1899
        %2447 = vst.msk [vmem:[%s254 + $0x160] sm:$0xff] %vm2402, %v1904
        %2448 = vst.msk [vmem:[%s254 + $0x168] sm:$0xff] %vm2402, %v1909
        %2449 = vst.msk [vmem:[%s254 + $0x170] sm:$0xff] %vm2402, %v1914
        %2450 = vst.msk [vmem:[%s254 + $0x178] sm:$0xff] %vm2402, %v1919
        %2451 = vst.msk [vmem:[%s254 + $0x180] sm:$0xff] %vm2402, %v1924
        %2452 = vst.msk [vmem:[%s254 + $0x188] sm:$0xff] %vm2402, %v1929
        %2453 = vst.msk [vmem:[%s254 + $0x190] sm:$0xff] %vm2402, %v1934
        %2454 = vst.msk [vmem:[%s254 + $0x198] sm:$0xff] %vm2402, %v1939
        %2455 = vst.msk [vmem:[%s254 + $0x1a0] sm:$0xff] %vm2402, %v1944
        %2456 = vst.msk [vmem:[%s254 + $0x1a8] sm:$0xff] %vm2402, %v1949
        %2457 = vst.msk [vmem:[%s254 + $0x1b0] sm:$0xff] %vm2402, %v1954
        %2458 = vst.msk [vmem:[%s254 + $0x1b8] sm:$0xff] %vm2402, %v1959
        %2459 = vst.msk [vmem:[%s254 + $0x1c0] sm:$0xff] %vm2402, %v1964
        %2460 = vst.msk [vmem:[%s254 + $0x1c8] sm:$0xff] %vm2402, %v1969
        %2461 = vst.msk [vmem:[%s254 + $0x1d0] sm:$0xff] %vm2402, %v1974
        %2462 = vst.msk [vmem:[%s254 + $0x1d8] sm:$0xff] %vm2402, %v1979
        %2463 = vst.msk [vmem:[%s254 + $0x1e0] sm:$0xff] %vm2402, %v1984
        %2464 = vst.msk [vmem:[%s254 + $0x1e8] sm:$0xff] %vm2402, %v1989
        %2465 = vst.msk [vmem:[%s254 + $0x1f0] sm:$0xff] %vm2402, %v1994
        %2466 = vst.msk [vmem:[%s254 + $0x1f8] sm:$0xff] %vm2402, %v1999
        %2467 = vst.msk [vmem:[%s254 + $0x200] sm:$0xff] %vm2402, %v2004
        %2468 = vst.msk [vmem:[%s254 + $0x208] sm:$0xff] %vm2402, %v2009
        %2469 = vst.msk [vmem:[%s254 + $0x210] sm:$0xff] %vm2402, %v2014
        %2470 = vst.msk [vmem:[%s254 + $0x218] sm:$0xff] %vm2402, %v2019
        %2471 = vst.msk [vmem:[%s254 + $0x220] sm:$0xff] %vm2402, %v2024
        %2472 = vst.msk [vmem:[%s254 + $0x228] sm:$0xff] %vm2402, %v2029
        %2473 = vst.msk [vmem:[%s254 + $0x230] sm:$0xff] %vm2402, %v2034
        %2474 = vst.msk [vmem:[%s254 + $0x238] sm:$0xff] %vm2402, %v2039
        %2475 = vst.msk [vmem:[%s254 + $0x240] sm:$0xff] %vm2402, %v2044
        %2476 = vst.msk [vmem:[%s254 + $0x248] sm:$0xff] %vm2402, %v2049
        %2477 = vst.msk [vmem:[%s254 + $0x250] sm:$0xff] %vm2402, %v2054
        %2478 = vst.msk [vmem:[%s254 + $0x258] sm:$0xff] %vm2402, %v2059
        %2479 = vst.msk [vmem:[%s254 + $0x260] sm:$0xff] %vm2402, %v2064
        %2480 = vst.msk [vmem:[%s254 + $0x268] sm:$0xff] %vm2402, %v2069
        %2481 = vst.msk [vmem:[%s254 + $0x270] sm:$0xff] %vm2402, %v2074
        %2482 = vst.msk [vmem:[%s254 + $0x278] sm:$0xff] %vm2402, %v2079
        %2483 = vst.msk [vmem:[%s254 + $0x280] sm:$0xff] %vm2402, %v2084
        %2484 = vst.msk [vmem:[%s254 + $0x288] sm:$0xff] %vm2402, %v2089
        %2485 = vst.msk [vmem:[%s254 + $0x290] sm:$0xff] %vm2402, %v2094
        %2486 = vst.msk [vmem:[%s254 + $0x298] sm:$0xff] %vm2402, %v2099
        %2487 = vst.msk [vmem:[%s254 + $0x2a0] sm:$0xff] %vm2402, %v2104
        %2488 = vst.msk [vmem:[%s254 + $0x2a8] sm:$0xff] %vm2402, %v2109
        %2489 = vst.msk [vmem:[%s254 + $0x2b0] sm:$0xff] %vm2402, %v2114
        %2490 = vst.msk [vmem:[%s254 + $0x2b8] sm:$0xff] %vm2402, %v2119
        %2491 = vst.msk [vmem:[%s254 + $0x2c0] sm:$0xff] %vm2402, %v2124
        %2492 = vst.msk [vmem:[%s254 + $0x2c8] sm:$0xff] %vm2402, %v2129
        %2493 = vst.msk [vmem:[%s254 + $0x2d0] sm:$0xff] %vm2402, %v2134
        %2494 = vst.msk [vmem:[%s254 + $0x2d8] sm:$0xff] %vm2402, %v2139
        %2495 = vst.msk [vmem:[%s254 + $0x2e0] sm:$0xff] %vm2402, %v2144
        %2496 = vst.msk [vmem:[%s254 + $0x2e8] sm:$0xff] %vm2402, %v2149
        %2497 = vst.msk [vmem:[%s254 + $0x2f0] sm:$0xff] %vm2402, %v2154
        %2498 = vst.msk [vmem:[%s254 + $0x2f8] sm:$0xff] %vm2402, %v2159
        %2499 = vst.msk [vmem:[%s254 + $0x300] sm:$0xff] %vm2402, %v2164
        %2500 = vst.msk [vmem:[%s254 + $0x308] sm:$0xff] %vm2402, %v2169
        %2501 = vst.msk [vmem:[%s254 + $0x310] sm:$0xff] %vm2402, %v2174
        %2502 = vst.msk [vmem:[%s254 + $0x318] sm:$0xff] %vm2402, %v2179
        %2503 = vst.msk [vmem:[%s254 + $0x320] sm:$0xff] %vm2402, %v2184
        %2504 = vst.msk [vmem:[%s254 + $0x328] sm:$0xff] %vm2402, %v2189
        %2505 = vst.msk [vmem:[%s254 + $0x330] sm:$0xff] %vm2402, %v2194
        %2506 = vst.msk [vmem:[%s254 + $0x338] sm:$0xff] %vm2402, %v2199
        %2507 = vst.msk [vmem:[%s254 + $0x340] sm:$0xff] %vm2402, %v2204
        %2508 = vst.msk [vmem:[%s254 + $0x348] sm:$0xff] %vm2402, %v2209
        %2509 = vst.msk [vmem:[%s254 + $0x350] sm:$0xff] %vm2402, %v2214
        %2510 = vst.msk [vmem:[%s254 + $0x358] sm:$0xff] %vm2402, %v2219
        %2511 = vst.msk [vmem:[%s254 + $0x360] sm:$0xff] %vm2402, %v2224
        %2512 = vst.msk [vmem:[%s254 + $0x368] sm:$0xff] %vm2402, %v2229
        %2513 = vst.msk [vmem:[%s254 + $0x370] sm:$0xff] %vm2402, %v2234
        %2514 = vst.msk [vmem:[%s254 + $0x378] sm:$0xff] %vm2402, %v2239
        %2515 = vst.msk [vmem:[%s254 + $0x380] sm:$0xff] %vm2402, %v2244
        %2516 = vst.msk [vmem:[%s254 + $0x388] sm:$0xff] %vm2402, %v2249
        %2517 = vst.msk [vmem:[%s254 + $0x390] sm:$0xff] %vm2402, %v2254
        %2518 = vst.msk [vmem:[%s254 + $0x398] sm:$0xff] %vm2402, %v2259
        %2519 = vst.msk [vmem:[%s254 + $0x3a0] sm:$0xff] %vm2402, %v2264
        %2520 = vst.msk [vmem:[%s254 + $0x3a8] sm:$0xff] %vm2402, %v2269
        %2521 = vst.msk [vmem:[%s254 + $0x3b0] sm:$0xff] %vm2402, %v2274
        %2522 = vst.msk [vmem:[%s254 + $0x3b8] sm:$0xff] %vm2402, %v2279
        %2523 = vst.msk [vmem:[%s254 + $0x3c0] sm:$0xff] %vm2402, %v2284
        %2524 = vst.msk [vmem:[%s254 + $0x3c8] sm:$0xff] %vm2402, %v2289
        %2525 = vst.msk [vmem:[%s254 + $0x3d0] sm:$0xff] %vm2402, %v2294
        %2526 = vst.msk [vmem:[%s254 + $0x3d8] sm:$0xff] %vm2402, %v2299
        %2527 = vst.msk [vmem:[%s254 + $0x3e0] sm:$0xff] %vm2402, %v2304
        %2528 = vst.msk [vmem:[%s254 + $0x3e8] sm:$0xff] %vm2402, %v2309
        %2529 = vst.msk [vmem:[%s254 + $0x3f0] sm:$0xff] %vm2402, %v2314
        %2530 = vst.msk [vmem:[%s254 + $0x3f8] sm:$0xff] %vm2402, %v2319
        %2531 = vst.msk [vmem:[%s254 + $0x400] sm:$0xff] %vm2402, %v2324
        %2532 = vst.msk [vmem:[%s254 + $0x408] sm:$0xff] %vm2402, %v2329
        %2533 = vst.msk [vmem:[%s254 + $0x410] sm:$0xff] %vm2402, %v2334
        %2534 = vst.msk [vmem:[%s254 + $0x418] sm:$0xff] %vm2402, %v2339
        %2535 = vst.msk [vmem:[%s254 + $0x420] sm:$0xff] %vm2402, %v2344
        %2536 = vst.msk [vmem:[%s254 + $0x428] sm:$0xff] %vm2402, %v2349
        %2537 = vst.msk [vmem:[%s254 + $0x430] sm:$0xff] %vm2402, %v2354
        %2538 = vst.msk [vmem:[%s254 + $0x438] sm:$0xff] %vm2402, %v2359
        %2539 = vst.msk [vmem:[%s254 + $0x440] sm:$0xff] %vm2402, %v2364
        %2540 = vst.msk [vmem:[%s254 + $0x448] sm:$0xff] %vm2402, %v2369
        %2541 = vst.msk [vmem:[%s254 + $0x450] sm:$0xff] %vm2402, %v2374
        %2542 = vst.msk [vmem:[%s254 + $0x458] sm:$0xff] %vm2402, %v2379
        %2543 = vst.msk [vmem:[%s254 + $0x460] sm:$0xff] %vm2402, %v2384
        %2544 = vst.msk [vmem:[%s254 + $0x468] sm:$0xff] %vm2402, %v2389
        %2545 = vst.msk [vmem:[%s254 + $0x470] sm:$0xff] %vm2402, %v2394
        %2546 = vst.msk [vmem:[%s254 + $0x478] sm:$0xff] %vm2402, %v2399
        %s2547 = smul.u32 144, %s21
        %p2548 = scmp.lt.s32.totalorder %s22, 0
        %s2549 = scalar_select %p2548, %s22, 0
        %p2550 = scmp.lt.s32.totalorder %s2547, 287
        %s2551 = scalar_select %p2550, %s2547, 287
        %s2552 = smul.addr %s2549, 288
        %s2553 = sadd.s32 %s2551, %s2552
        %s2554 = smul.addr %s2553, 8
        %s2555 = scalar_lea.vmem %s3, %s2554
        // Predicated region
        $region37: #{tpu_custom_call.1} parent=31 // pred_check
          %p2556 = pneg %p127
        $region38: #{tpu_custom_call.1} parent=31 // pred_check_branch
          %2558 = sbr.rel (%p2556) target = $region40
        $region39: #{tpu_custom_call.1} parent=31 // pred_region
          %s2559 = smul.u32 144, %s21
        $region40: #{tpu_custom_call.1} parent=31 // pred_fallthru
          _
      $region32: #{tpu_custom_call.1} parent=5 // pred_fallthru
        _
      %p2560 = scmp.le.s32.totalorder 2, %s12
      // Predicated region
      $region41: #{tpu_custom_call.1} parent=5 // pred_check
        %p2561 = pneg %p2560
      $region42: #{tpu_custom_call.1} parent=5 // pred_check_branch
        %2563 = sbr.rel (%p2561) target = $region44
      $region43: #{tpu_custom_call.1} parent=5 // pred_region
        %s2564 = ssub.s32 %s12, 2
        // Predicated region
        $region45: #{tpu_custom_call.1} parent=43 // pred_check
          %p2565 = pneg %p133
        $region46: #{tpu_custom_call.1} parent=43 // pred_check_branch
          %2567 = sbr.rel (%p2565) target = $region48
        $region47: #{tpu_custom_call.1} parent=43 // pred_region
          %s2568 = smul.u32 144, %s23
          %p2569 = scmp.lt.s32.totalorder %s24, 0
          %s2570 = scalar_select %p2569, %s24, 0
          %p2571 = scmp.lt.s32.totalorder %s2568, 287
          %s2572 = scalar_select %p2571, %s2568, 287
          %s2573 = smul.addr %s2570, 288
          %s2574 = sadd.s32 %s2572, %s2573
          %s2575 = smul.addr %s2574, 8
          %s2576 = scalar_lea.vmem %s3, %s2575
        $region48: #{tpu_custom_call.1} parent=43 // pred_fallthru
          _
      $region44: #{tpu_custom_call.1} parent=5 // pred_fallthru
        _
    $region6: #{tpu_custom_call.1} parent=1 // loop_footer
      %s16 = sadd.s32 1, %s12
    $region7: #{tpu_custom_call.1} parent=1 // loop_footer_branch
      %11 = sbr.rel target = $region3
    $region8: #{tpu_custom_call.1} parent=1 // loop_exit
      _
    %2577 = vsyncpa [#allocation3], 1
    %s2578 = scalar_lea.sflag [#allocation3], 1
    %2579 = vsyncpa %s2578, 1

</llo_original>
